<compile_context>
chip_gen: v7x
topology: tpu7x:2x2x1
jax: 0.10.0
libtpu: 0.0.40
codegen_flags: <defaults>
</compile_context>

<pallas_src>
import functools

import jax
import jax.numpy as jnp
from jax.experimental import pallas as pl
from jax.experimental.pallas import tpu as pltpu

LANE = 128                     # pad every feature/class (lane) dim to this multiple
PREF_TM = 256                  # preferred node tile (output rows per grid step)
PREF_TK = 512                  # preferred neighbor tile (A@x contraction)
X_RESIDENT_BUDGET = 8 * 1024 * 1024   # resident-x if 2 pipeline copies fit here


def _round_up(n, m):
    return ((n + m - 1) // m) * m


def _pad2(a, rows, cols):
    return jnp.pad(a, ((0, rows - a.shape[0]), (0, cols - a.shape[1])))


def _default_vmem_limit_bytes():
    try:
        kind = jax.devices()[0].device_kind.lower()
    except Exception:
        kind = ""
    if "v7" in kind:
        return 48 * 1024 * 1024          # v7x: 64 MiB physical VMEM per TensorCore
    if any(f"v{g}" in kind for g in (2, 3, 4, 5, 6)):
        return 96 * 1024 * 1024          # 128 MiB physical VMEM on v2-v6
    return 48 * 1024 * 1024              # unknown chip: stay conservative


def _pick_tile(n_pad, preferred):
    t = min(preferred, n_pad)
    t -= t % LANE
    while n_pad % t:
        t -= LANE
    return t


def _pick_node_tiles(n_pad):
    tm = _pick_tile(n_pad, PREF_TM)
    tk = _pick_tile(n_pad, PREF_TK)
    # keep >= 2 node tiles when possible so both v7x TensorCores stay busy
    if n_pad // tm < 2 and tm >= 2 * LANE:
        tm //= 2
    return tm, tk


# ----------------------------------------------------------------------------
# Kernel 1: one fused GraphSage layer, tiled over (node_tile i, neighbor_tile k)
#   out = relu( F.normalize( x @ Wl + bl + inv_deg * (Counts @ x) @ Wr + br ) )
# ----------------------------------------------------------------------------
def _sage_finalize(acc_ref, selfh_ref, invdeg_ref, wr_ref, br_ref, o_ref):
    # exact f32 1/deg row scale, then bf16 cast only for the MXU operand
    agg = (acc_ref[...] * invdeg_ref[...]).astype(jnp.bfloat16)
    h = (selfh_ref[...]
         + jnp.dot(agg, wr_ref[...], preferred_element_type=jnp.float32)
         + br_ref[...])
    # F.normalize(h, p=2, dim=1, eps=1e-12); padded lanes are exactly zero
    # (zero-padded weights + biases), so the sum of squares is exact.
    ssq = jnp.sum(h * h, axis=-1, keepdims=True)
    inv = jax.lax.rsqrt(jnp.maximum(ssq, 1e-24))   # == 1 / max(||h||, 1e-12)
    o_ref[...] = jnp.maximum(h * inv, 0.0).astype(o_ref.dtype)   # F.relu


def sage_kernel_resident(a_ref, x_ref, invdeg_ref, wl_ref, bl_ref, wr_ref, br_ref,
                         o_ref, acc_ref, selfh_ref, *, tm, tk):
    i = pl.program_id(0)
    k = pl.program_id(1)

    @pl.when(k == 0)
    def _init():
        acc_ref[...] = jnp.zeros_like(acc_ref)
        # self-term overlapped with the A-tile stream instead of the finalize
        row = pl.multiple_of(i * tm, tm)
        xs = x_ref[pl.ds(row, tm), :]
        selfh_ref[...] = (jnp.dot(xs, wl_ref[...],
                                  preferred_element_type=jnp.float32)
                          + bl_ref[...])

    # partial aggregation: acc[i] += Counts[i, k] @ x[k]
    # (int8 counts -> f32 -> bf16 is exact for small multiplicities)
    a = a_ref[...].astype(jnp.float32).astype(jnp.bfloat16)
    col = pl.multiple_of(k * tk, tk)
    xk = x_ref[pl.ds(col, tk), :]
    acc_ref[...] += jnp.dot(a, xk, preferred_element_type=jnp.float32)

    @pl.when(k == pl.num_programs(1) - 1)
    def _fin():
        _sage_finalize(acc_ref, selfh_ref, invdeg_ref, wr_ref, br_ref, o_ref)


def sage_kernel_streamed(a_ref, xk_ref, xs_ref, invdeg_ref, wl_ref, bl_ref,
                         wr_ref, br_ref, o_ref, acc_ref, selfh_ref):
    k = pl.program_id(1)

    @pl.when(k == 0)
    def _init():
        acc_ref[...] = jnp.zeros_like(acc_ref)
        selfh_ref[...] = (jnp.dot(xs_ref[...], wl_ref[...],
                                  preferred_element_type=jnp.float32)
                          + bl_ref[...])

    a = a_ref[...].astype(jnp.float32).astype(jnp.bfloat16)
    acc_ref[...] += jnp.dot(a, xk_ref[...], preferred_element_type=jnp.float32)

    @pl.when(k == pl.num_programs(1) - 1)
    def _fin():
        _sage_finalize(acc_ref, selfh_ref, invdeg_ref, wr_ref, br_ref, o_ref)


def sage_layer(a_counts, inv_deg, x, wl, bl, wr, br, *, vmem_limit):
    n = a_counts.shape[0]          # padded node count
    f = x.shape[1]                 # padded input feature dim
    h = wl.shape[1]                # padded hidden dim
    tm, tk = _pick_node_tiles(n)
    grid = (n // tm, n // tk)

    # keep x fully VMEM-resident when two pipeline copies fit the budget
    resident = 2 * n * f * x.dtype.itemsize <= X_RESIDENT_BUDGET
    if resident:
        kernel = functools.partial(sage_kernel_resident, tm=tm, tk=tk)
        in_specs = [
            pl.BlockSpec((tm, tk), lambda i, k: (i, k)),   # Counts tile (int8)
            pl.BlockSpec((n, f), lambda i, k: (0, 0)),     # x, fully resident
            pl.BlockSpec((tm, 1), lambda i, k: (i, 0)),    # 1/deg rows (f32)
            pl.BlockSpec((f, h), lambda i, k: (0, 0)),     # Wl (untiled)
            pl.BlockSpec((1, h), lambda i, k: (0, 0)),     # bl
            pl.BlockSpec((f, h), lambda i, k: (0, 0)),     # Wr (untiled)
            pl.BlockSpec((1, h), lambda i, k: (0, 0)),     # br
        ]
        args = (a_counts, x, inv_deg, wl, bl, wr, br)
    else:
        kernel = sage_kernel_streamed
        in_specs = [
            pl.BlockSpec((tm, tk), lambda i, k: (i, k)),   # Counts tile (int8)
            pl.BlockSpec((tk, f), lambda i, k: (k, 0)),    # x rows (agg)
            pl.BlockSpec((tm, f), lambda i, k: (i, 0)),    # x rows (self)
            pl.BlockSpec((tm, 1), lambda i, k: (i, 0)),    # 1/deg rows (f32)
            pl.BlockSpec((f, h), lambda i, k: (0, 0)),     # Wl
            pl.BlockSpec((1, h), lambda i, k: (0, 0)),     # bl
            pl.BlockSpec((f, h), lambda i, k: (0, 0)),     # Wr
            pl.BlockSpec((1, h), lambda i, k: (0, 0)),     # br
        ]
        args = (a_counts, x, x, inv_deg, wl, bl, wr, br)

    return pl.pallas_call(
        kernel,
        out_shape=jax.ShapeDtypeStruct((n, h), jnp.bfloat16),
        grid_spec=pltpu.PrefetchScalarGridSpec(
            num_scalar_prefetch=0,
            grid=grid,
            in_specs=in_specs,
            out_specs=pl.BlockSpec((tm, h), lambda i, k: (i, 0)),
            scratch_shapes=[pltpu.VMEM((tm, f), jnp.float32),   # A@x accumulator
                            pltpu.VMEM((tm, h), jnp.float32)],  # self-term
        ),
        compiler_params=pltpu.CompilerParams(
            dimension_semantics=("parallel", "arbitrary"),
            vmem_limit_bytes=vmem_limit,
        ),
    )(*args)


# ----------------------------------------------------------------------------
# Kernel 2: post_mp (Linear -> Dropout(eval) -> Linear) [+ log_softmax(dim=1)]
# tiled over node tiles; padded class lanes are masked out of the softmax.
# ----------------------------------------------------------------------------
def post_mp_kernel(x_ref, w1_ref, b1_ref, w2_ref, b2_ref, o_ref, *,
                   out_dim, apply_log_softmax):
    h = jnp.dot(x_ref[...], w1_ref[...],
                preferred_element_type=jnp.float32) + b1_ref[...]
    logits = jnp.dot(h.astype(jnp.bfloat16), w2_ref[...],
                     preferred_element_type=jnp.float32) + b2_ref[...]
    if not apply_log_softmax:
        o_ref[...] = logits
        return
    col = jax.lax.broadcasted_iota(jnp.int32, logits.shape, dimension=1)
    logits = jnp.where(col < out_dim, logits, jnp.full_like(logits, -1e30))
    m = jnp.max(logits, axis=-1, keepdims=True)
    z = logits - m
    lse = jnp.log(jnp.sum(jnp.exp(z), axis=-1, keepdims=True))
    o_ref[...] = z - lse


def post_mp(x, w1, b1, w2, b2, *, out_dim, apply_log_softmax, vmem_limit):
    n, f = x.shape
    h = w1.shape[1]
    o = w2.shape[1]
    tm = _pick_tile(n, 512)   # weights resident; amortize per-step overhead
    kernel = functools.partial(post_mp_kernel, out_dim=out_dim,
                               apply_log_softmax=apply_log_softmax)
    return pl.pallas_call(
        kernel,
        out_shape=jax.ShapeDtypeStruct((n, o), jnp.float32),
        grid_spec=pltpu.PrefetchScalarGridSpec(
            num_scalar_prefetch=0,
            grid=(n // tm,),
            in_specs=[
                pl.BlockSpec((tm, f), lambda i: (i, 0)),
                pl.BlockSpec((f, h), lambda i: (0, 0)),
                pl.BlockSpec((1, h), lambda i: (0, 0)),
                pl.BlockSpec((h, o), lambda i: (0, 0)),
                pl.BlockSpec((1, o), lambda i: (0, 0)),
            ],
            out_specs=pl.BlockSpec((tm, o), lambda i: (i, 0)),
        ),
        compiler_params=pltpu.CompilerParams(
            dimension_semantics=("parallel",),
            vmem_limit_bytes=vmem_limit,
        ),
    )(x, w1, b1, w2, b2)


# ----------------------------------------------------------------------------
# Adjacency preprocessing (hoisted out of the jitted forward, reused per call)
# ----------------------------------------------------------------------------
def build_adjacency(edge_index, num_nodes, n_pad):
    """Dense int8 edge-count matrix + exact f32 1/in-degree, zero-padded."""
    src, dst = edge_index[0], edge_index[1]
    counts = jnp.zeros((num_nodes, num_nodes), jnp.int32).at[dst, src].add(1)
    deg = jnp.sum(counts, axis=1, keepdims=True).astype(jnp.float32)
    inv_deg = 1.0 / jnp.maximum(deg, 1.0)          # zero-in-degree rows stay zero
    # edge multiplicity > 127 is clipped (not expected for these graphs)
    counts = jnp.minimum(counts, 127).astype(jnp.int8)
    return _pad2(counts, n_pad, n_pad), _pad2(inv_deg, n_pad, 1)


# ----------------------------------------------------------------------------
# GNNStack forward (padding glue in JAX, hot paths in Pallas)
# ----------------------------------------------------------------------------
def gnnstack_forward(x, adj_counts, inv_deg, params, num_layers, emb=False):
    n, f_in = x.shape
    n_pad = adj_counts.shape[0]
    out_dim = params["post_mp"][2].shape[1]
    f_pad = _round_up(f_in, LANE)
    vmem_limit = _default_vmem_limit_bytes()

    xp = _pad2(x.astype(jnp.float32), n_pad, f_pad).astype(jnp.bfloat16)

    for i in range(num_layers):
        wl, bl, wr, br = params["convs"][i]
        din_pad = _round_up(wl.shape[0], LANE)
        h_pad = _round_up(wl.shape[1], LANE)
        xp = sage_layer(
            adj_counts, inv_deg, xp,
            _pad2(wl, din_pad, h_pad).astype(jnp.bfloat16),
            _pad2(bl, 1, h_pad),
            _pad2(wr, din_pad, h_pad).astype(jnp.bfloat16),
            _pad2(br, 1, h_pad),
            vmem_limit=vmem_limit,
        )
        # F.dropout(p, training=False) -> identity

    w1, b1, w2, b2 = params["post_mp"]
    h1_pad = _round_up(w1.shape[0], LANE)
    h2_pad = _round_up(w1.shape[1], LANE)
    o_pad = _round_up(w2.shape[1], LANE)
    out_full = post_mp(
        xp,
        _pad2(w1, h1_pad, h2_pad).astype(jnp.bfloat16),
        _pad2(b1, 1, h2_pad),
        _pad2(w2, h2_pad, o_pad).astype(jnp.bfloat16),
        _pad2(b2, 1, o_pad),
        out_dim=out_dim,
        apply_log_softmax=not emb,
        vmem_limit=vmem_limit,
    )
    return out_full[:n, :out_dim]


def init_params(key, input_dim, hidden_dim, output_dim, num_layers, heads=1):
    params = {"convs": [], "post_mp": None}
    dims_in = [input_dim] + [heads * hidden_dim] * (num_layers - 1)
    for din in dims_in:
        key, k1, k2, k3, k4 = jax.random.split(key, 5)
        wl = jax.random.normal(k1, (din, hidden_dim), jnp.float32) * 0.1
        bl = jax.random.normal(k2, (1, hidden_dim), jnp.float32) * 0.1
        wr = jax.random.normal(k3, (din, hidden_dim), jnp.float32) * 0.1
        br = jax.random.normal(k4, (1, hidden_dim), jnp.float32) * 0.1
        params["convs"].append((wl, bl, wr, br))
    key, k1, k2, k3, k4 = jax.random.split(key, 5)
    w1 = jax.random.normal(k1, (heads * hidden_dim, hidden_dim), jnp.float32) * 0.1
    b1 = jax.random.normal(k2, (1, hidden_dim), jnp.float32) * 0.1
    w2 = jax.random.normal(k3, (hidden_dim, output_dim), jnp.float32) * 0.1
    b2 = jax.random.normal(k4, (1, output_dim), jnp.float32) * 0.1
    params["post_mp"] = (w1, b1, w2, b2)
    return params


if __name__ == "__main__":
    key = jax.random.PRNGKey(0)

    N = 16            # nodes
    INPUT_DIM = 8
    HIDDEN_DIM = 32
    OUTPUT_DIM = 4
    NUM_LAYERS = 2
    HEADS = 1

    kx, ke, kp = jax.random.split(key, 3)
    x = jax.random.normal(kx, (N, INPUT_DIM), jnp.float32)

    # small synthetic directed graph: ring + a few random edges
    ring_src = jnp.arange(N, dtype=jnp.int32)
    ring_dst = (ring_src + 1) % N
    extra_src = jax.random.randint(ke, (8,), 0, N, dtype=jnp.int32)
    extra_dst = (extra_src + 5) % N
    edge_index = jnp.stack(
        [jnp.concatenate([ring_src, extra_src]), jnp.concatenate([ring_dst, extra_dst])]
    )

    params = init_params(kp, INPUT_DIM, HIDDEN_DIM, OUTPUT_DIM, NUM_LAYERS, HEADS)

    # adjacency (scatter + degree) built once, outside the jitted forward
    n_pad = _round_up(max(N, LANE), LANE)
    adj_counts, inv_deg = build_adjacency(edge_index, N, n_pad)
    adj_counts, inv_deg = jax.block_until_ready((adj_counts, inv_deg))

    fwd = jax.jit(functools.partial(gnnstack_forward, num_layers=NUM_LAYERS, emb=False))
    out = fwd(x, adj_counts, inv_deg, params)
    out = jax.block_until_ready(out)

    assert out.shape == (N, OUTPUT_DIM)
    # log_softmax rows should exponentiate-sum to ~1
    assert jnp.allclose(jnp.sum(jnp.exp(out), axis=1), 1.0, atol=1e-4)
    print("KERNEL_OK")
</pallas_src>

<mosaic_0001>
module attributes {stable_mosaic.version = 11 : i64} {
  func.func @sage_kernel_resident(%arg0: i32, %arg1: i32, %arg2: memref<128x128xi8, #tpu.memory_space<vmem>>, %arg3: memref<128x128xbf16, #tpu.memory_space<vmem>>, %arg4: memref<128x1xf32, #tpu.memory_space<vmem>>, %arg5: memref<128x128xbf16, #tpu.memory_space<vmem>>, %arg6: memref<1x128xf32, #tpu.memory_space<vmem>>, %arg7: memref<128x128xbf16, #tpu.memory_space<vmem>>, %arg8: memref<1x128xf32, #tpu.memory_space<vmem>>, %arg9: memref<128x128xbf16, #tpu.memory_space<vmem>>, %arg10: memref<128x128xf32, #tpu.memory_space<vmem>>, %arg11: memref<128x128xf32, #tpu.memory_space<vmem>>) attributes {dimension_semantics = [#tpu.dimension_semantics<parallel>, #tpu.dimension_semantics<arbitrary>], iteration_bounds = array<i64: 1, 1>, scalar_prefetch = 0 : i64, scratch_operands = 2 : i64, tpu.core_type = #tpu.core_type<tc>, window_params = [{transform_indices = @transform_0, window_bounds = array<i64: 128, 128>}, {pipeline_mode = #tpu.pipeline_mode<synchronous>, transform_indices = @transform_1, window_bounds = array<i64: 128, 128>}, {transform_indices = @transform_2, window_bounds = array<i64: 128, 1>}, {pipeline_mode = #tpu.pipeline_mode<synchronous>, transform_indices = @transform_3, window_bounds = array<i64: 128, 128>}, {pipeline_mode = #tpu.pipeline_mode<synchronous>, transform_indices = @transform_4, window_bounds = array<i64: 1, 128>}, {pipeline_mode = #tpu.pipeline_mode<synchronous>, transform_indices = @transform_5, window_bounds = array<i64: 128, 128>}, {pipeline_mode = #tpu.pipeline_mode<synchronous>, transform_indices = @transform_6, window_bounds = array<i64: 1, 128>}, {transform_indices = @transform_7, window_bounds = array<i64: 128, 128>}]} {
    %c0_i32 = arith.constant 0 : i32
    %0 = arith.cmpi eq, %arg1, %c0_i32 : i32
    %1 = arith.extui %0 : i1 to i32
    %c0_i32_0 = arith.constant 0 : i32
    %2 = arith.cmpi ne, %1, %c0_i32_0 : i32
    scf.if %2 {
      %cst_9 = arith.constant 0.000000e+00 : f32
      %17 = vector.broadcast %cst_9 : f32 to vector<128x128xf32>
      %c0_10 = arith.constant 0 : index
      %c0_11 = arith.constant 0 : index
      %18 = vector.load %arg10[%c0_10, %c0_11] : memref<128x128xf32, #tpu.memory_space<vmem>>, vector<128x128xf32>
      tpu.vector_store %arg10[%c0_10, %c0_11], %17 {strides = array<i32>} : memref<128x128xf32, #tpu.memory_space<vmem>>, vector<128x128xf32>,
      %c128_i32_12 = arith.constant 128 : i32
      %19 = arith.muli %arg0, %c128_i32_12 : i32
      %20 = tpu.assume_multiple %19, 128 : i32
      %21 = arith.index_cast %20 : i32 to index
      %c0_13 = arith.constant 0 : index
      %22 = vector.load %arg3[%21, %c0_13] : memref<128x128xbf16, #tpu.memory_space<vmem>>, vector<128x128xbf16>
      %c0_14 = arith.constant 0 : index
      %c0_15 = arith.constant 0 : index
      %23 = vector.load %arg5[%c0_14, %c0_15] : memref<128x128xbf16, #tpu.memory_space<vmem>>, vector<128x128xbf16>
      %cst_16 = arith.constant dense<0.000000e+00> : vector<128x128xf32>
      %24 = tpu.matmul %22, %23, %cst_16 {dimension_numbers = #tpu.dot_dimension_numbers<[1], [0], [0], [1], [0, 0, 1, 1], [], []>} : vector<128x128xbf16>, vector<128x128xbf16>, vector<128x128xf32> -> vector<128x128xf32>
      %c0_17 = arith.constant 0 : index
      %c0_18 = arith.constant 0 : index
      %25 = vector.load %arg6[%c0_17, %c0_18] : memref<1x128xf32, #tpu.memory_space<vmem>>, vector<1x128xf32>
      %26 = vector.broadcast %25 : vector<1x128xf32> to vector<128x128xf32>
      %27 = arith.addf %24, %26 : vector<128x128xf32>
      %c0_19 = arith.constant 0 : index
      %c0_20 = arith.constant 0 : index
      %28 = vector.load %arg11[%c0_19, %c0_20] : memref<128x128xf32, #tpu.memory_space<vmem>>, vector<128x128xf32>
      tpu.vector_store %arg11[%c0_19, %c0_20], %27 {strides = array<i32>} : memref<128x128xf32, #tpu.memory_space<vmem>>, vector<128x128xf32>,
    } else {
    }
    %c0 = arith.constant 0 : index
    %c0_1 = arith.constant 0 : index
    %3 = vector.load %arg2[%c0, %c0_1] : memref<128x128xi8, #tpu.memory_space<vmem>>, vector<128x128xi8>
    %4 = arith.sitofp %3 : vector<128x128xi8> to vector<128x128xf32>
    %5 = arith.truncf %4 : vector<128x128xf32> to vector<128x128xbf16>
    %c128_i32 = arith.constant 128 : i32
    %6 = arith.muli %arg1, %c128_i32 : i32
    %7 = tpu.assume_multiple %6, 128 : i32
    %8 = arith.index_cast %7 : i32 to index
    %c0_2 = arith.constant 0 : index
    %9 = vector.load %arg3[%8, %c0_2] : memref<128x128xbf16, #tpu.memory_space<vmem>>, vector<128x128xbf16>
    %c0_3 = arith.constant 0 : index
    %c0_4 = arith.constant 0 : index
    %10 = vector.load %arg10[%c0_3, %c0_4] : memref<128x128xf32, #tpu.memory_space<vmem>>, vector<128x128xf32>
    %cst = arith.constant dense<0.000000e+00> : vector<128x128xf32>
    %11 = tpu.matmul %5, %9, %cst {dimension_numbers = #tpu.dot_dimension_numbers<[1], [0], [0], [1], [0, 0, 1, 1], [], []>} : vector<128x128xbf16>, vector<128x128xbf16>, vector<128x128xf32> -> vector<128x128xf32>
    %12 = arith.addf %10, %11 : vector<128x128xf32>
    %c0_5 = arith.constant 0 : index
    %c0_6 = arith.constant 0 : index
    %13 = vector.load %arg10[%c0_5, %c0_6] : memref<128x128xf32, #tpu.memory_space<vmem>>, vector<128x128xf32>
    tpu.vector_store %arg10[%c0_5, %c0_6], %12 {strides = array<i32>} : memref<128x128xf32, #tpu.memory_space<vmem>>, vector<128x128xf32>,
    %c0_i32_7 = arith.constant 0 : i32
    %14 = arith.cmpi eq, %arg1, %c0_i32_7 : i32
    %15 = arith.extui %14 : i1 to i32
    %c0_i32_8 = arith.constant 0 : i32
    %16 = arith.cmpi ne, %15, %c0_i32_8 : i32
    scf.if %16 {
      %c0_9 = arith.constant 0 : index
      %c0_10 = arith.constant 0 : index
      %17 = vector.load %arg10[%c0_9, %c0_10] : memref<128x128xf32, #tpu.memory_space<vmem>>, vector<128x128xf32>
      %c0_11 = arith.constant 0 : index
      %c0_12 = arith.constant 0 : index
      %18 = vector.load %arg4[%c0_11, %c0_12] : memref<128x1xf32, #tpu.memory_space<vmem>>, vector<128x1xf32>
      %19 = vector.broadcast %18 : vector<128x1xf32> to vector<128x128xf32>
      %20 = arith.mulf %17, %19 : vector<128x128xf32>
      %21 = arith.truncf %20 : vector<128x128xf32> to vector<128x128xbf16>
      %c0_13 = arith.constant 0 : index
      %c0_14 = arith.constant 0 : index
      %22 = vector.load %arg11[%c0_13, %c0_14] : memref<128x128xf32, #tpu.memory_space<vmem>>, vector<128x128xf32>
      %c0_15 = arith.constant 0 : index
      %c0_16 = arith.constant 0 : index
      %23 = vector.load %arg7[%c0_15, %c0_16] : memref<128x128xbf16, #tpu.memory_space<vmem>>, vector<128x128xbf16>
      %cst_17 = arith.constant dense<0.000000e+00> : vector<128x128xf32>
      %24 = tpu.matmul %21, %23, %cst_17 {dimension_numbers = #tpu.dot_dimension_numbers<[1], [0], [0], [1], [0, 0, 1, 1], [], []>} : vector<128x128xbf16>, vector<128x128xbf16>, vector<128x128xf32> -> vector<128x128xf32>
      %25 = arith.addf %22, %24 : vector<128x128xf32>
      %c0_18 = arith.constant 0 : index
      %c0_19 = arith.constant 0 : index
      %26 = vector.load %arg8[%c0_18, %c0_19] : memref<1x128xf32, #tpu.memory_space<vmem>>, vector<1x128xf32>
      %27 = vector.broadcast %26 : vector<1x128xf32> to vector<128x128xf32>
      %28 = arith.addf %25, %27 : vector<128x128xf32>
      %29 = arith.mulf %28, %28 : vector<128x128xf32>
      %cst_20 = arith.constant dense<0.000000e+00> : vector<128xf32>
      %30 = vector.multi_reduction <add>, %29, %cst_20 [1] : vector<128x128xf32> to vector<128xf32>
      %31 = vector.shape_cast %30 : vector<128xf32> to vector<128x1xf32>
      %cst_21 = arith.constant 1.000000e-24 : f32
      %32 = vector.broadcast %cst_21 : f32 to vector<128x1xf32>
      %33 = arith.maximumf %31, %32 : vector<128x1xf32>
      %34 = math.rsqrt %33 : vector<128x1xf32>
      %35 = vector.broadcast %34 : vector<128x1xf32> to vector<128x128xf32>
      %36 = arith.mulf %28, %35 : vector<128x128xf32>
      %cst_22 = arith.constant 0.000000e+00 : f32
      %37 = vector.broadcast %cst_22 : f32 to vector<128x128xf32>
      %38 = arith.maximumf %36, %37 : vector<128x128xf32>
      %39 = arith.truncf %38 : vector<128x128xf32> to vector<128x128xbf16>
      %c0_23 = arith.constant 0 : index
      %c0_24 = arith.constant 0 : index
      %40 = vector.load %arg9[%c0_23, %c0_24] : memref<128x128xbf16, #tpu.memory_space<vmem>>, vector<128x128xbf16>
      tpu.vector_store %arg9[%c0_23, %c0_24], %39 {strides = array<i32>} : memref<128x128xbf16, #tpu.memory_space<vmem>>, vector<128x128xbf16>,
    } else {
    }
    return
  }
  func.func @transform_0(%arg0: i32, %arg1: i32) -> (i32, i32) {
    %c0_i32 = arith.constant 0 : i32
    return %arg0, %arg1 : i32, i32
  }
  func.func @transform_1(%arg0: i32, %arg1: i32) -> (i32, i32) {
    %c0_i32 = arith.constant 0 : i32
    %c0_i32_0 = arith.constant 0 : i32
    %c0_i32_1 = arith.constant 0 : i32
    return %c0_i32, %c0_i32_0 : i32, i32
  }
  func.func @transform_2(%arg0: i32, %arg1: i32) -> (i32, i32) {
    %c0_i32 = arith.constant 0 : i32
    %c0_i32_0 = arith.constant 0 : i32
    return %arg0, %c0_i32 : i32, i32
  }
  func.func @transform_3(%arg0: i32, %arg1: i32) -> (i32, i32) {
    %c0_i32 = arith.constant 0 : i32
    %c0_i32_0 = arith.constant 0 : i32
    %c0_i32_1 = arith.constant 0 : i32
    return %c0_i32, %c0_i32_0 : i32, i32
  }
  func.func @transform_4(%arg0: i32, %arg1: i32) -> (i32, i32) {
    %c0_i32 = arith.constant 0 : i32
    %c0_i32_0 = arith.constant 0 : i32
    %c0_i32_1 = arith.constant 0 : i32
    return %c0_i32, %c0_i32_0 : i32, i32
  }
  func.func @transform_5(%arg0: i32, %arg1: i32) -> (i32, i32) {
    %c0_i32 = arith.constant 0 : i32
    %c0_i32_0 = arith.constant 0 : i32
    %c0_i32_1 = arith.constant 0 : i32
    return %c0_i32, %c0_i32_0 : i32, i32
  }
  func.func @transform_6(%arg0: i32, %arg1: i32) -> (i32, i32) {
    %c0_i32 = arith.constant 0 : i32
    %c0_i32_0 = arith.constant 0 : i32
    %c0_i32_1 = arith.constant 0 : i32
    return %c0_i32, %c0_i32_0 : i32, i32
  }
  func.func @transform_7(%arg0: i32, %arg1: i32) -> (i32, i32) {
    %c0_i32 = arith.constant 0 : i32
    %c0_i32_0 = arith.constant 0 : i32
    return %arg0, %c0_i32 : i32, i32
  }
}

module attributes {stable_mosaic.version = 11 : i64} {
  func.func @post_mp_kernel(%arg0: i32, %arg1: memref<128x128xbf16, #tpu.memory_space<vmem>>, %arg2: memref<128x128xbf16, #tpu.memory_space<vmem>>, %arg3: memref<1x128xf32, #tpu.memory_space<vmem>>, %arg4: memref<128x128xbf16, #tpu.memory_space<vmem>>, %arg5: memref<1x128xf32, #tpu.memory_space<vmem>>, %arg6: memref<128x128xf32, #tpu.memory_space<vmem>>) attributes {dimension_semantics = [#tpu.dimension_semantics<parallel>], iteration_bounds = array<i64: 1>, scalar_prefetch = 0 : i64, scratch_operands = 0 : i64, tpu.core_type = #tpu.core_type<tc>, window_params = [{transform_indices = @transform_0, window_bounds = array<i64: 128, 128>}, {pipeline_mode = #tpu.pipeline_mode<synchronous>, transform_indices = @transform_1, window_bounds = array<i64: 128, 128>}, {pipeline_mode = #tpu.pipeline_mode<synchronous>, transform_indices = @transform_2, window_bounds = array<i64: 1, 128>}, {pipeline_mode = #tpu.pipeline_mode<synchronous>, transform_indices = @transform_3, window_bounds = array<i64: 128, 128>}, {pipeline_mode = #tpu.pipeline_mode<synchronous>, transform_indices = @transform_4, window_bounds = array<i64: 1, 128>}, {transform_indices = @transform_5, window_bounds = array<i64: 128, 128>}]} {
    %c0 = arith.constant 0 : index
    %c0_0 = arith.constant 0 : index
    %0 = vector.load %arg1[%c0, %c0_0] : memref<128x128xbf16, #tpu.memory_space<vmem>>, vector<128x128xbf16>
    %c0_1 = arith.constant 0 : index
    %c0_2 = arith.constant 0 : index
    %1 = vector.load %arg2[%c0_1, %c0_2] : memref<128x128xbf16, #tpu.memory_space<vmem>>, vector<128x128xbf16>
    %cst = arith.constant dense<0.000000e+00> : vector<128x128xf32>
    %2 = tpu.matmul %0, %1, %cst {dimension_numbers = #tpu.dot_dimension_numbers<[1], [0], [0], [1], [0, 0, 1, 1], [], []>} : vector<128x128xbf16>, vector<128x128xbf16>, vector<128x128xf32> -> vector<128x128xf32>
    %c0_3 = arith.constant 0 : index
    %c0_4 = arith.constant 0 : index
    %3 = vector.load %arg3[%c0_3, %c0_4] : memref<1x128xf32, #tpu.memory_space<vmem>>, vector<1x128xf32>
    %4 = vector.broadcast %3 : vector<1x128xf32> to vector<128x128xf32>
    %5 = arith.addf %2, %4 : vector<128x128xf32>
    %6 = arith.truncf %5 : vector<128x128xf32> to vector<128x128xbf16>
    %c0_5 = arith.constant 0 : index
    %c0_6 = arith.constant 0 : index
    %7 = vector.load %arg4[%c0_5, %c0_6] : memref<128x128xbf16, #tpu.memory_space<vmem>>, vector<128x128xbf16>
    %cst_7 = arith.constant dense<0.000000e+00> : vector<128x128xf32>
    %8 = tpu.matmul %6, %7, %cst_7 {dimension_numbers = #tpu.dot_dimension_numbers<[1], [0], [0], [1], [0, 0, 1, 1], [], []>} : vector<128x128xbf16>, vector<128x128xbf16>, vector<128x128xf32> -> vector<128x128xf32>
    %c0_8 = arith.constant 0 : index
    %c0_9 = arith.constant 0 : index
    %9 = vector.load %arg5[%c0_8, %c0_9] : memref<1x128xf32, #tpu.memory_space<vmem>>, vector<1x128xf32>
    %10 = vector.broadcast %9 : vector<1x128xf32> to vector<128x128xf32>
    %11 = arith.addf %8, %10 : vector<128x128xf32>
    %12 = tpu.iota {dimensions = array<i32: 1>} : vector<128x128xi32>
    %c4_i32 = arith.constant 4 : i32
    %13 = vector.broadcast %c4_i32 : i32 to vector<128x128xi32>
    %14 = arith.cmpi slt, %12, %13 : vector<128x128xi32>
    %cst_10 = arith.constant -1.000000e+30 : f32
    %15 = vector.broadcast %cst_10 : f32 to vector<128x128xf32>
    %16 = arith.select %14, %11, %15 : vector<128x128xi1>, vector<128x128xf32>
    %cst_11 = arith.constant dense<0xFF800000> : vector<128xf32>
    %17 = vector.multi_reduction <maximumf>, %16, %cst_11 [1] : vector<128x128xf32> to vector<128xf32>
    %18 = vector.shape_cast %17 : vector<128xf32> to vector<128x1xf32>
    %19 = vector.broadcast %18 : vector<128x1xf32> to vector<128x128xf32>
    %20 = arith.subf %16, %19 : vector<128x128xf32>
    %21 = math.exp %20 : vector<128x128xf32>
    %cst_12 = arith.constant dense<0.000000e+00> : vector<128xf32>
    %22 = vector.multi_reduction <add>, %21, %cst_12 [1] : vector<128x128xf32> to vector<128xf32>
    %23 = vector.shape_cast %22 : vector<128xf32> to vector<128x1xf32>
    %24 = math.log %23 : vector<128x1xf32>
    %25 = vector.broadcast %24 : vector<128x1xf32> to vector<128x128xf32>
    %26 = arith.subf %20, %25 : vector<128x128xf32>
    %c0_13 = arith.constant 0 : index
    %c0_14 = arith.constant 0 : index
    %27 = vector.load %arg6[%c0_13, %c0_14] : memref<128x128xf32, #tpu.memory_space<vmem>>, vector<128x128xf32>
    tpu.vector_store %arg6[%c0_13, %c0_14], %26 {strides = array<i32>} : memref<128x128xf32, #tpu.memory_space<vmem>>, vector<128x128xf32>,
    return
  }
  func.func @transform_0(%arg0: i32) -> (i32, i32) {
    %c0_i32 = arith.constant 0 : i32
    %c0_i32_0 = arith.constant 0 : i32
    return %arg0, %c0_i32 : i32, i32
  }
  func.func @transform_1(%arg0: i32) -> (i32, i32) {
    %c0_i32 = arith.constant 0 : i32
    %c0_i32_0 = arith.constant 0 : i32
    %c0_i32_1 = arith.constant 0 : i32
    return %c0_i32, %c0_i32_0 : i32, i32
  }
  func.func @transform_2(%arg0: i32) -> (i32, i32) {
    %c0_i32 = arith.constant 0 : i32
    %c0_i32_0 = arith.constant 0 : i32
    %c0_i32_1 = arith.constant 0 : i32
    return %c0_i32, %c0_i32_0 : i32, i32
  }
  func.func @transform_3(%arg0: i32) -> (i32, i32) {
    %c0_i32 = arith.constant 0 : i32
    %c0_i32_0 = arith.constant 0 : i32
    %c0_i32_1 = arith.constant 0 : i32
    return %c0_i32, %c0_i32_0 : i32, i32
  }
  func.func @transform_4(%arg0: i32) -> (i32, i32) {
    %c0_i32 = arith.constant 0 : i32
    %c0_i32_0 = arith.constant 0 : i32
    %c0_i32_1 = arith.constant 0 : i32
    return %c0_i32, %c0_i32_0 : i32, i32
  }
  func.func @transform_5(%arg0: i32) -> (i32, i32) {
    %c0_i32 = arith.constant 0 : i32
    %c0_i32_0 = arith.constant 0 : i32
    return %arg0, %c0_i32 : i32, i32
  }
}

</mosaic_0001>

<llo_original>
// kernel: gnnstack_forward.5
$region0: #{gnnstack_forward.5}
  #allocation0 [shape = 'u32[]', space=smem, size = 0x4, offset = 0x4, fixed_abs, tag = 'smem constant byte address 0x4 - core index']
  #allocation1 [shape = 'u32[144,128]{1,0:T(1,128)}', space=vmem, size = 0x12000, scoped, tag = 'internal scratch']
  %s0 = inlined_call_operand.vmem [shape: bf16[128,128], index: 0, kind: input, shape index: {}]
  %s1 = inlined_call_operand.vmem [shape: bf16[128,128], index: 1, kind: input, shape index: {}]
  %s2 = inlined_call_operand.vmem [shape: f32[1,128], index: 2, kind: input, shape index: {}]
  %s3 = inlined_call_operand.vmem [shape: bf16[128,128], index: 3, kind: input, shape index: {}]
  %s4 = inlined_call_operand.vmem [shape: f32[1,128], index: 4, kind: input, shape index: {}]
  %s5 = inlined_call_operand.vmem [shape: f32[128,128], index: 5, kind: output, shape index: {}]
  %s6 = sld [smem:[#allocation0]]
  $region30: #{gnnstack_forward.5} parent=0
    _
  %s8 = ssub.s32 1, %s6
  %s9 = scalar_select 0, %s8, %s6
  // Predicated region
  $region2: #{gnnstack_forward.5} parent=0 // pred_check
    _
  $region3: #{gnnstack_forward.5} parent=0 // pred_check_branch
    %11 = sbr.rel (0) target = $region5
  $region4: #{gnnstack_forward.5} parent=0 // pred_region
    _
  $region5: #{gnnstack_forward.5} parent=0 // pred_fallthru
    _
  // Predicated region
  $region6: #{gnnstack_forward.5} parent=0 // pred_check
    _
  $region7: #{gnnstack_forward.5} parent=0 // pred_check_branch
    %13 = sbr.rel (0) target = $region9
  $region8: #{gnnstack_forward.5} parent=0 // pred_region
    _
  $region9: #{gnnstack_forward.5} parent=0 // pred_fallthru
    _
  // Predicated region
  $region10: #{gnnstack_forward.5} parent=0 // pred_check
    _
  $region11: #{gnnstack_forward.5} parent=0 // pred_check_branch
    %15 = sbr.rel (0) target = $region13
  $region12: #{gnnstack_forward.5} parent=0 // pred_region
    _
  $region13: #{gnnstack_forward.5} parent=0 // pred_fallthru
    _
  // Predicated region
  $region14: #{gnnstack_forward.5} parent=0 // pred_check
    _
  $region15: #{gnnstack_forward.5} parent=0 // pred_check_branch
    %17 = sbr.rel (0) target = $region17
  $region16: #{gnnstack_forward.5} parent=0 // pred_region
    _
  $region17: #{gnnstack_forward.5} parent=0 // pred_fallthru
    _
  // Predicated region
  $region18: #{gnnstack_forward.5} parent=0 // pred_check
    _
  $region19: #{gnnstack_forward.5} parent=0 // pred_check_branch
    %19 = sbr.rel (0) target = $region21
  $region20: #{gnnstack_forward.5} parent=0 // pred_region
    _
  $region21: #{gnnstack_forward.5} parent=0 // pred_fallthru
    _
  %v21 = vld [vmem:[%s0] sm:$0xf]
  %v22 = vld [vmem:[%s0 + $0x4] sm:$0xf]
  %v23 = vld [vmem:[%s0 + $0x8] sm:$0xf]
  %v24 = vld [vmem:[%s0 + $0xc] sm:$0xf]
  %v25 = vld [vmem:[%s0 + $0x10] sm:$0xf]
  %v26 = vld [vmem:[%s0 + $0x14] sm:$0xf]
  %v27 = vld [vmem:[%s0 + $0x18] sm:$0xf]
  %v28 = vld [vmem:[%s0 + $0x1c] sm:$0xf]
  %v29 = vld [vmem:[%s0 + $0x20] sm:$0xf]
  %v30 = vld [vmem:[%s0 + $0x24] sm:$0xf]
  %v31 = vld [vmem:[%s0 + $0x28] sm:$0xf]
  %v32 = vld [vmem:[%s0 + $0x2c] sm:$0xf]
  %v33 = vld [vmem:[%s0 + $0x30] sm:$0xf]
  %v34 = vld [vmem:[%s0 + $0x34] sm:$0xf]
  %v35 = vld [vmem:[%s0 + $0x38] sm:$0xf]
  %v36 = vld [vmem:[%s0 + $0x3c] sm:$0xf]
  %v37 = vld [vmem:[%s1] sm:$0xf]
  %v38 = vld [vmem:[%s1 + $0x4] sm:$0xf]
  %v39 = vld [vmem:[%s1 + $0x8] sm:$0xf]
  %v40 = vld [vmem:[%s1 + $0xc] sm:$0xf]
  %v41 = vld [vmem:[%s1 + $0x10] sm:$0xf]
  %v42 = vld [vmem:[%s1 + $0x14] sm:$0xf]
  %v43 = vld [vmem:[%s1 + $0x18] sm:$0xf]
  %v44 = vld [vmem:[%s1 + $0x1c] sm:$0xf]
  %v45 = vld [vmem:[%s1 + $0x20] sm:$0xf]
  %v46 = vld [vmem:[%s1 + $0x24] sm:$0xf]
  %v47 = vld [vmem:[%s1 + $0x28] sm:$0xf]
  %v48 = vld [vmem:[%s1 + $0x2c] sm:$0xf]
  %v49 = vld [vmem:[%s1 + $0x30] sm:$0xf]
  %v50 = vld [vmem:[%s1 + $0x34] sm:$0xf]
  %v51 = vld [vmem:[%s1 + $0x38] sm:$0xf]
  %v52 = vld [vmem:[%s1 + $0x3c] sm:$0xf]
  %v53 = vld [vmem:[%s2] sm:$0x1]
  %v55 = vlaneseq
  %v56 = vshrl.u32 %v55, 7
  %v57 = vsub.s32 0, %v56
  %v58 = vrot.slane %v53, %v57
  %v76 = vunpack.c.l.b16 %v21
  %v77 = vunpack.c.l.b16 %v22
  %v78 = vunpack.c.l.b16 %v23
  %v79 = vunpack.c.l.b16 %v24
  %v80 = vunpack.c.l.b16 %v25
  %v81 = vunpack.c.l.b16 %v26
  %v82 = vunpack.c.l.b16 %v27
  %v83 = vunpack.c.l.b16 %v28
  %v84 = vunpack.c.l.b16 %v29
  %v85 = vunpack.c.l.b16 %v30
  %v86 = vunpack.c.l.b16 %v31
  %v87 = vunpack.c.l.b16 %v32
  %v88 = vunpack.c.l.b16 %v33
  %v89 = vunpack.c.l.b16 %v34
  %v90 = vunpack.c.l.b16 %v35
  %v91 = vunpack.c.l.b16 %v36
  %v92 = vpack.c.b16 %v77, %v76
  %v93 = vpack.c.b16 %v79, %v78
  %v94 = vpack.c.b16 %v81, %v80
  %v95 = vpack.c.b16 %v83, %v82
  %v96 = vpack.c.b16 %v85, %v84
  %v97 = vpack.c.b16 %v87, %v86
  %v98 = vpack.c.b16 %v89, %v88
  %v99 = vpack.c.b16 %v91, %v90
  %v124 = vunpack.c.l.b16 %v37
  %v125 = vunpack.c.l.b16 %v38
  %v126 = vunpack.c.l.b16 %v39
  %v127 = vunpack.c.l.b16 %v40
  %v128 = vunpack.c.l.b16 %v41
  %v129 = vunpack.c.l.b16 %v42
  %v130 = vunpack.c.l.b16 %v43
  %v131 = vunpack.c.l.b16 %v44
  %v132 = vunpack.c.l.b16 %v45
  %v133 = vunpack.c.l.b16 %v46
  %v134 = vunpack.c.l.b16 %v47
  %v135 = vunpack.c.l.b16 %v48
  %v136 = vunpack.c.l.b16 %v49
  %v137 = vunpack.c.l.b16 %v50
  %v138 = vunpack.c.l.b16 %v51
  %v139 = vunpack.c.l.b16 %v52
  %v140 = vpack.c.b16 %v125, %v124
  %v141 = vpack.c.b16 %v127, %v126
  %v142 = vpack.c.b16 %v129, %v128
  %v143 = vpack.c.b16 %v131, %v130
  %v144 = vpack.c.b16 %v133, %v132
  %v145 = vpack.c.b16 %v135, %v134
  %v146 = vpack.c.b16 %v137, %v136
  %v147 = vpack.c.b16 %v139, %v138
  %156 = vmatprep.subr.bf16.mxu0 0
  %157 = vmatpush1.bf16.msra.mxu0 %v140
  %158 = vmatprep.subr.bf16.mxu0 0
  %159 = vmatpush1.bf16.msra.mxu0 %v141
  %160 = vmatprep.subr.bf16.mxu0 0
  %161 = vmatpush1.bf16.msra.mxu0 %v142
  %162 = vmatprep.subr.bf16.mxu0 0
  %163 = vmatpush1.bf16.msra.mxu0 %v143
  %164 = vmatprep.subr.bf16.mxu0 0
  %165 = vmatpush1.bf16.msra.mxu0 %v144
  %166 = vmatprep.subr.bf16.mxu0 0
  %167 = vmatpush1.bf16.msra.mxu0 %v145
  %168 = vmatprep.subr.bf16.mxu0 0
  %169 = vmatpush1.bf16.msra.mxu0 %v146
  %170 = vmatprep.subr.bf16.mxu0 0
  %171 = vmatpush1.bf16.msra.mxu0 %v147
  %172 = vmatprep.subr.bf16.mxu0 0
  %173 = vmatpush1.bf16.msra.mxu0 0
  %174 = vmatprep.subr.bf16.mxu0 0
  %175 = vmatpush1.bf16.msra.mxu0 0
  %176 = vmatprep.subr.bf16.mxu0 0
  %177 = vmatpush1.bf16.msra.mxu0 0
  %178 = vmatprep.subr.bf16.mxu0 0
  %179 = vmatpush1.bf16.msra.mxu0 0
  %180 = vmatprep.subr.bf16.mxu0 0
  %181 = vmatpush1.bf16.msra.mxu0 0
  %182 = vmatprep.subr.bf16.mxu0 0
  %183 = vmatpush1.bf16.msra.mxu0 0
  %184 = vmatprep.subr.bf16.mxu0 0
  %185 = vmatpush1.bf16.msra.mxu0 0
  %186 = vmatprep.subr.bf16.mxu0 0
  %187 = vmatpush1.bf16.msra.mxu0 0
  %188 = vmatprep.mubr.bf16.mxu0 0
  %189 = vmatmul.mubr.bf16.gmra.mrb[0].mxu0 %v92
  %v190 = vpop.f32.mrb[0].mxu0
  %v191 = vadd.f32 %v58, %v190
  %v192 = vpop.f32.mrb[0].mxu0
  %v193 = vpop.f32.mrb[0].mxu0
  %v194 = vadd.f32 %v58, %v193
  %v195 = vpop.f32.mrb[0].mxu0
  %196 = vmatprep.mubr.bf16.mxu0 0
  %197 = vmatmul.mubr.bf16.gmra.mrb[0].mxu0 %v93
  %v198 = vpop.f32.mrb[0].mxu0
  %v199 = vadd.f32 %v58, %v198
  %v200 = vpop.f32.mrb[0].mxu0
  %v201 = vpop.f32.mrb[0].mxu0
  %v202 = vadd.f32 %v58, %v201
  %v203 = vpop.f32.mrb[0].mxu0
  %204 = vmatprep.mubr.bf16.mxu0 0
  %205 = vmatmul.mubr.bf16.gmra.mrb[0].mxu0 %v94
  %v206 = vpop.f32.mrb[0].mxu0
  %v207 = vadd.f32 %v58, %v206
  %v208 = vpop.f32.mrb[0].mxu0
  %v209 = vpop.f32.mrb[0].mxu0
  %v210 = vadd.f32 %v58, %v209
  %v211 = vpop.f32.mrb[0].mxu0
  %212 = vmatprep.mubr.bf16.mxu0 0
  %213 = vmatmul.mubr.bf16.gmra.mrb[0].mxu0 %v95
  %v214 = vpop.f32.mrb[0].mxu0
  %v215 = vadd.f32 %v58, %v214
  %v216 = vpop.f32.mrb[0].mxu0
  %v217 = vpop.f32.mrb[0].mxu0
  %v218 = vadd.f32 %v58, %v217
  %v219 = vpop.f32.mrb[0].mxu0
  %220 = vmatprep.mubr.bf16.mxu0 0
  %221 = vmatmul.mubr.bf16.gmra.mrb[0].mxu0 %v96
  %v222 = vpop.f32.mrb[0].mxu0
  %v223 = vadd.f32 %v58, %v222
  %v224 = vpop.f32.mrb[0].mxu0
  %v225 = vpop.f32.mrb[0].mxu0
  %v226 = vadd.f32 %v58, %v225
  %v227 = vpop.f32.mrb[0].mxu0
  %228 = vmatprep.mubr.bf16.mxu0 0
  %229 = vmatmul.mubr.bf16.gmra.mrb[0].mxu0 %v97
  %v230 = vpop.f32.mrb[0].mxu0
  %v231 = vadd.f32 %v58, %v230
  %v232 = vpop.f32.mrb[0].mxu0
  %v233 = vpop.f32.mrb[0].mxu0
  %v234 = vadd.f32 %v58, %v233
  %v235 = vpop.f32.mrb[0].mxu0
  %236 = vmatprep.mubr.bf16.mxu0 0
  %237 = vmatmul.mubr.bf16.gmra.mrb[0].mxu0 %v98
  %v238 = vpop.f32.mrb[0].mxu0
  %v239 = vadd.f32 %v58, %v238
  %v240 = vpop.f32.mrb[0].mxu0
  %v241 = vpop.f32.mrb[0].mxu0
  %v242 = vadd.f32 %v58, %v241
  %v243 = vpop.f32.mrb[0].mxu0
  %244 = vmatprep.mubr.bf16.mxu0 0
  %245 = vmatmul.mubr.bf16.gmra.mrb[0].mxu0 %v99
  %v246 = vpop.f32.mrb[0].mxu0
  %v247 = vadd.f32 %v58, %v246
  %v248 = vpop.f32.mrb[0].mxu0
  %v249 = vpop.f32.mrb[0].mxu0
  %v250 = vadd.f32 %v58, %v249
  %v251 = vpop.f32.mrb[0].mxu0
  %252 = vdwg.mxu0
  %v253 = vpack.c.bf16 %v194, %v191
  %v254 = vpack.c.bf16 %v202, %v199
  %v255 = vpack.c.bf16 %v210, %v207
  %v256 = vpack.c.bf16 %v218, %v215
  %v257 = vpack.c.bf16 %v226, %v223
  %v258 = vpack.c.bf16 %v234, %v231
  %v259 = vpack.c.bf16 %v242, %v239
  %v260 = vpack.c.bf16 %v250, %v247
  %v261 = vld [vmem:[%s3] sm:$0xf]
  %v262 = vld [vmem:[%s3 + $0x4] sm:$0xf]
  %v263 = vld [vmem:[%s3 + $0x8] sm:$0xf]
  %v264 = vld [vmem:[%s3 + $0xc] sm:$0xf]
  %v265 = vld [vmem:[%s3 + $0x10] sm:$0xf]
  %v266 = vld [vmem:[%s3 + $0x14] sm:$0xf]
  %v267 = vld [vmem:[%s3 + $0x18] sm:$0xf]
  %v268 = vld [vmem:[%s3 + $0x1c] sm:$0xf]
  %v269 = vld [vmem:[%s3 + $0x20] sm:$0xf]
  %v270 = vld [vmem:[%s3 + $0x24] sm:$0xf]
  %v271 = vld [vmem:[%s3 + $0x28] sm:$0xf]
  %v272 = vld [vmem:[%s3 + $0x2c] sm:$0xf]
  %v273 = vld [vmem:[%s3 + $0x30] sm:$0xf]
  %v274 = vld [vmem:[%s3 + $0x34] sm:$0xf]
  %v275 = vld [vmem:[%s3 + $0x38] sm:$0xf]
  %v276 = vld [vmem:[%s3 + $0x3c] sm:$0xf]
  %v277 = vld [vmem:[%s4] sm:$0x1]
  %v279 = vlaneseq
  %v280 = vshrl.u32 %v279, 7
  %v281 = vsub.s32 0, %v280
  %v282 = vrot.slane %v277, %v281
  %v300 = vunpack.c.l.b16 %v261
  %v301 = vunpack.c.l.b16 %v262
  %v302 = vunpack.c.l.b16 %v263
  %v303 = vunpack.c.l.b16 %v264
  %v304 = vunpack.c.l.b16 %v265
  %v305 = vunpack.c.l.b16 %v266
  %v306 = vunpack.c.l.b16 %v267
  %v307 = vunpack.c.l.b16 %v268
  %v308 = vunpack.c.l.b16 %v269
  %v309 = vunpack.c.l.b16 %v270
  %v310 = vunpack.c.l.b16 %v271
  %v311 = vunpack.c.l.b16 %v272
  %v312 = vunpack.c.l.b16 %v273
  %v313 = vunpack.c.l.b16 %v274
  %v314 = vunpack.c.l.b16 %v275
  %v315 = vunpack.c.l.b16 %v276
  %v316 = vpack.c.b16 %v301, %v300
  %v317 = vpack.c.b16 %v303, %v302
  %v318 = vpack.c.b16 %v305, %v304
  %v319 = vpack.c.b16 %v307, %v306
  %v320 = vpack.c.b16 %v309, %v308
  %v321 = vpack.c.b16 %v311, %v310
  %v322 = vpack.c.b16 %v313, %v312
  %v323 = vpack.c.b16 %v315, %v314
  %332 = vmatprep.subr.bf16.mxu0 0
  %333 = vmatpush1.bf16.msra.mxu0 %v316
  %334 = vmatprep.subr.bf16.mxu0 0
  %335 = vmatpush1.bf16.msra.mxu0 %v317
  %336 = vmatprep.subr.bf16.mxu0 0
  %337 = vmatpush1.bf16.msra.mxu0 %v318
  %338 = vmatprep.subr.bf16.mxu0 0
  %339 = vmatpush1.bf16.msra.mxu0 %v319
  %340 = vmatprep.subr.bf16.mxu0 0
  %341 = vmatpush1.bf16.msra.mxu0 %v320
  %342 = vmatprep.subr.bf16.mxu0 0
  %343 = vmatpush1.bf16.msra.mxu0 %v321
  %344 = vmatprep.subr.bf16.mxu0 0
  %345 = vmatpush1.bf16.msra.mxu0 %v322
  %346 = vmatprep.subr.bf16.mxu0 0
  %347 = vmatpush1.bf16.msra.mxu0 %v323
  %348 = vmatprep.subr.bf16.mxu0 0
  %349 = vmatpush1.bf16.msra.mxu0 0
  %350 = vmatprep.subr.bf16.mxu0 0
  %351 = vmatpush1.bf16.msra.mxu0 0
  %352 = vmatprep.subr.bf16.mxu0 0
  %353 = vmatpush1.bf16.msra.mxu0 0
  %354 = vmatprep.subr.bf16.mxu0 0
  %355 = vmatpush1.bf16.msra.mxu0 0
  %356 = vmatprep.subr.bf16.mxu0 0
  %357 = vmatpush1.bf16.msra.mxu0 0
  %358 = vmatprep.subr.bf16.mxu0 0
  %359 = vmatpush1.bf16.msra.mxu0 0
  %360 = vmatprep.subr.bf16.mxu0 0
  %361 = vmatpush1.bf16.msra.mxu0 0
  %362 = vmatprep.subr.bf16.mxu0 0
  %363 = vmatpush1.bf16.msra.mxu0 0
  %364 = vmatprep.mubr.bf16.mxu0 0
  %365 = vmatmul.mubr.bf16.gmra.mrb[0].mxu0 %v253
  %v366 = vpop.f32.mrb[0].mxu0
  %v367 = vadd.f32 %v282, %v366
  %v368 = vpop.f32.mrb[0].mxu0
  %v369 = vpop.f32.mrb[0].mxu0
  %v370 = vadd.f32 %v282, %v369
  %v371 = vpop.f32.mrb[0].mxu0
  %372 = vmatprep.mubr.bf16.mxu0 0
  %373 = vmatmul.mubr.bf16.gmra.mrb[0].mxu0 %v254
  %v374 = vpop.f32.mrb[0].mxu0
  %v375 = vadd.f32 %v282, %v374
  %v376 = vpop.f32.mrb[0].mxu0
  %v377 = vpop.f32.mrb[0].mxu0
  %v378 = vadd.f32 %v282, %v377
  %v379 = vpop.f32.mrb[0].mxu0
  %380 = vmatprep.mubr.bf16.mxu0 0
  %381 = vmatmul.mubr.bf16.gmra.mrb[0].mxu0 %v255
  %v382 = vpop.f32.mrb[0].mxu0
  %v383 = vadd.f32 %v282, %v382
  %v384 = vpop.f32.mrb[0].mxu0
  %v385 = vpop.f32.mrb[0].mxu0
  %v386 = vadd.f32 %v282, %v385
  %v387 = vpop.f32.mrb[0].mxu0
  %388 = vmatprep.mubr.bf16.mxu0 0
  %389 = vmatmul.mubr.bf16.gmra.mrb[0].mxu0 %v256
  %v390 = vpop.f32.mrb[0].mxu0
  %v391 = vadd.f32 %v282, %v390
  %v392 = vpop.f32.mrb[0].mxu0
  %v393 = vpop.f32.mrb[0].mxu0
  %v394 = vadd.f32 %v282, %v393
  %v395 = vpop.f32.mrb[0].mxu0
  %396 = vmatprep.mubr.bf16.mxu0 0
  %397 = vmatmul.mubr.bf16.gmra.mrb[0].mxu0 %v257
  %v398 = vpop.f32.mrb[0].mxu0
  %v399 = vadd.f32 %v282, %v398
  %v400 = vpop.f32.mrb[0].mxu0
  %v401 = vpop.f32.mrb[0].mxu0
  %v402 = vadd.f32 %v282, %v401
  %v403 = vpop.f32.mrb[0].mxu0
  %404 = vmatprep.mubr.bf16.mxu0 0
  %405 = vmatmul.mubr.bf16.gmra.mrb[0].mxu0 %v258
  %v406 = vpop.f32.mrb[0].mxu0
  %v407 = vadd.f32 %v282, %v406
  %v408 = vpop.f32.mrb[0].mxu0
  %v409 = vpop.f32.mrb[0].mxu0
  %v410 = vadd.f32 %v282, %v409
  %v411 = vpop.f32.mrb[0].mxu0
  %412 = vmatprep.mubr.bf16.mxu0 0
  %413 = vmatmul.mubr.bf16.gmra.mrb[0].mxu0 %v259
  %v414 = vpop.f32.mrb[0].mxu0
  %v415 = vadd.f32 %v282, %v414
  %v416 = vpop.f32.mrb[0].mxu0
  %v417 = vpop.f32.mrb[0].mxu0
  %v418 = vadd.f32 %v282, %v417
  %v419 = vpop.f32.mrb[0].mxu0
  %420 = vmatprep.mubr.bf16.mxu0 0
  %421 = vmatmul.mubr.bf16.gmra.mrb[0].mxu0 %v260
  %v422 = vpop.f32.mrb[0].mxu0
  %v423 = vadd.f32 %v282, %v422
  %v424 = vpop.f32.mrb[0].mxu0
  %v425 = vpop.f32.mrb[0].mxu0
  %v426 = vadd.f32 %v282, %v425
  %v427 = vpop.f32.mrb[0].mxu0
  %428 = vdwg.mxu0
  %v429 = vlaneseq
  %v430 = vand.u32 %v429, 127
  %vm431 = vcmp.lt.s32.totalorder %v430, 4
  %v432 = vsel %vm431, %v367, -1e+30
  %v433 = vsel %vm431, %v370, -1e+30
  %v434 = vsel %vm431, %v375, -1e+30
  %v435 = vsel %vm431, %v378, -1e+30
  %v436 = vsel %vm431, %v383, -1e+30
  %v437 = vsel %vm431, %v386, -1e+30
  %v438 = vsel %vm431, %v391, -1e+30
  %v439 = vsel %vm431, %v394, -1e+30
  %v440 = vsel %vm431, %v399, -1e+30
  %v441 = vsel %vm431, %v402, -1e+30
  %v442 = vsel %vm431, %v407, -1e+30
  %v443 = vsel %vm431, %v410, -1e+30
  %v444 = vsel %vm431, %v415, -1e+30
  %v445 = vsel %vm431, %v418, -1e+30
  %v446 = vsel %vm431, %v423, -1e+30
  %v447 = vsel %vm431, %v426, -1e+30
  %448 = vmax.xlane.f32.xlu0 %v432
  %v449 = vpop.xlane.xlu0 %448
  %450 = vmax.xlane.f32.xlu0 %v433
  %v451 = vpop.xlane.xlu0 %450
  %452 = vmax.xlane.f32.xlu0 %v434
  %v453 = vpop.xlane.xlu0 %452
  %454 = vmax.xlane.f32.xlu0 %v435
  %v455 = vpop.xlane.xlu0 %454
  %456 = vmax.xlane.f32.xlu0 %v436
  %v457 = vpop.xlane.xlu0 %456
  %458 = vmax.xlane.f32.xlu0 %v437
  %v459 = vpop.xlane.xlu0 %458
  %460 = vmax.xlane.f32.xlu0 %v438
  %v461 = vpop.xlane.xlu0 %460
  %462 = vmax.xlane.f32.xlu0 %v439
  %v463 = vpop.xlane.xlu0 %462
  %464 = vmax.xlane.f32.xlu0 %v440
  %v465 = vpop.xlane.xlu0 %464
  %466 = vmax.xlane.f32.xlu0 %v441
  %v467 = vpop.xlane.xlu0 %466
  %468 = vmax.xlane.f32.xlu0 %v442
  %v469 = vpop.xlane.xlu0 %468
  %470 = vmax.xlane.f32.xlu0 %v443
  %v471 = vpop.xlane.xlu0 %470
  %472 = vmax.xlane.f32.xlu0 %v444
  %v473 = vpop.xlane.xlu0 %472
  %474 = vmax.xlane.f32.xlu0 %v445
  %v475 = vpop.xlane.xlu0 %474
  %476 = vmax.xlane.f32.xlu0 %v446
  %v477 = vpop.xlane.xlu0 %476
  %478 = vmax.xlane.f32.xlu0 %v447
  %v479 = vpop.xlane.xlu0 %478
  %v480 = vsub.f32 %v432, %v449
  %v481 = vsub.f32 %v433, %v451
  %v482 = vsub.f32 %v434, %v453
  %v483 = vsub.f32 %v435, %v455
  %v484 = vsub.f32 %v436, %v457
  %v485 = vsub.f32 %v437, %v459
  %v486 = vsub.f32 %v438, %v461
  %v487 = vsub.f32 %v439, %v463
  %v488 = vsub.f32 %v440, %v465
  %v489 = vsub.f32 %v441, %v467
  %v490 = vsub.f32 %v442, %v469
  %v491 = vsub.f32 %v443, %v471
  %v492 = vsub.f32 %v444, %v473
  %v493 = vsub.f32 %v445, %v475
  %v494 = vsub.f32 %v446, %v477
  %v495 = vsub.f32 %v447, %v479
  %v496 = vmul.f32 %v480, 1.442695
  %v497 = vpow.pop %v496
  %v498 = vmul.f32 %v481, 1.442695
  %v499 = vpow.pop %v498
  %v500 = vmul.f32 %v482, 1.442695
  %v501 = vpow.pop %v500
  %v502 = vmul.f32 %v483, 1.442695
  %v503 = vpow.pop %v502
  %v504 = vmul.f32 %v484, 1.442695
  %v505 = vpow.pop %v504
  %v506 = vmul.f32 %v485, 1.442695
  %v507 = vpow.pop %v506
  %v508 = vmul.f32 %v486, 1.442695
  %v509 = vpow.pop %v508
  %v510 = vmul.f32 %v487, 1.442695
  %v511 = vpow.pop %v510
  %v512 = vmul.f32 %v488, 1.442695
  %v513 = vpow.pop %v512
  %v514 = vmul.f32 %v489, 1.442695
  %v515 = vpow.pop %v514
  %v516 = vmul.f32 %v490, 1.442695
  %v517 = vpow.pop %v516
  %v518 = vmul.f32 %v491, 1.442695
  %v519 = vpow.pop %v518
  %v520 = vmul.f32 %v492, 1.442695
  %v521 = vpow.pop %v520
  %v522 = vmul.f32 %v493, 1.442695
  %v523 = vpow.pop %v522
  %v524 = vmul.f32 %v494, 1.442695
  %v525 = vpow.pop %v524
  %v526 = vmul.f32 %v495, 1.442695
  %v527 = vpow.pop %v526
  %528 = vadd.xlane.f32.xlu0 %v497
  %v529 = vpop.xlane.xlu0 %528
  %530 = vadd.xlane.f32.xlu0 %v499
  %v531 = vpop.xlane.xlu0 %530
  %532 = vadd.xlane.f32.xlu0 %v501
  %v533 = vpop.xlane.xlu0 %532
  %534 = vadd.xlane.f32.xlu0 %v503
  %v535 = vpop.xlane.xlu0 %534
  %536 = vadd.xlane.f32.xlu0 %v505
  %v537 = vpop.xlane.xlu0 %536
  %538 = vadd.xlane.f32.xlu0 %v507
  %v539 = vpop.xlane.xlu0 %538
  %540 = vadd.xlane.f32.xlu0 %v509
  %v541 = vpop.xlane.xlu0 %540
  %542 = vadd.xlane.f32.xlu0 %v511
  %v543 = vpop.xlane.xlu0 %542
  %544 = vadd.xlane.f32.xlu0 %v513
  %v545 = vpop.xlane.xlu0 %544
  %546 = vadd.xlane.f32.xlu0 %v515
  %v547 = vpop.xlane.xlu0 %546
  %548 = vadd.xlane.f32.xlu0 %v517
  %v549 = vpop.xlane.xlu0 %548
  %550 = vadd.xlane.f32.xlu0 %v519
  %v551 = vpop.xlane.xlu0 %550
  %552 = vadd.xlane.f32.xlu0 %v521
  %v553 = vpop.xlane.xlu0 %552
  %554 = vadd.xlane.f32.xlu0 %v523
  %v555 = vpop.xlane.xlu0 %554
  %556 = vadd.xlane.f32.xlu0 %v525
  %v557 = vpop.xlane.xlu0 %556
  %558 = vadd.xlane.f32.xlu0 %v527
  %v559 = vpop.xlane.xlu0 %558
  %v560 = vlog2.pop %v529
  %v561 = vmul.f32 %v560, 0.6931472
  %v562 = vlog2.pop %v531
  %v563 = vmul.f32 %v562, 0.6931472
  %v564 = vlog2.pop %v533
  %v565 = vmul.f32 %v564, 0.6931472
  %v566 = vlog2.pop %v535
  %v567 = vmul.f32 %v566, 0.6931472
  %v568 = vlog2.pop %v537
  %v569 = vmul.f32 %v568, 0.6931472
  %v570 = vlog2.pop %v539
  %v571 = vmul.f32 %v570, 0.6931472
  %v572 = vlog2.pop %v541
  %v573 = vmul.f32 %v572, 0.6931472
  %v574 = vlog2.pop %v543
  %v575 = vmul.f32 %v574, 0.6931472
  %v576 = vlog2.pop %v545
  %v577 = vmul.f32 %v576, 0.6931472
  %v578 = vlog2.pop %v547
  %v579 = vmul.f32 %v578, 0.6931472
  %v580 = vlog2.pop %v549
  %v581 = vmul.f32 %v580, 0.6931472
  %v582 = vlog2.pop %v551
  %v583 = vmul.f32 %v582, 0.6931472
  %v584 = vlog2.pop %v553
  %v585 = vmul.f32 %v584, 0.6931472
  %v586 = vlog2.pop %v555
  %v587 = vmul.f32 %v586, 0.6931472
  %v588 = vlog2.pop %v557
  %v589 = vmul.f32 %v588, 0.6931472
  %v590 = vlog2.pop %v559
  %v591 = vmul.f32 %v590, 0.6931472
  %v592 = vsub.f32 %v480, %v561
  %v593 = vsub.f32 %v481, %v563
  %v594 = vsub.f32 %v482, %v565
  %v595 = vsub.f32 %v483, %v567
  %v596 = vsub.f32 %v484, %v569
  %v597 = vsub.f32 %v485, %v571
  %v598 = vsub.f32 %v486, %v573
  %v599 = vsub.f32 %v487, %v575
  %v600 = vsub.f32 %v488, %v577
  %v601 = vsub.f32 %v489, %v579
  %v602 = vsub.f32 %v490, %v581
  %v603 = vsub.f32 %v491, %v583
  %v604 = vsub.f32 %v492, %v585
  %v605 = vsub.f32 %v493, %v587
  %v606 = vsub.f32 %v494, %v589
  %v607 = vsub.f32 %v495, %v591
  %608 = vst [vmem:[%s5] sm:$0xff] %v592
  %609 = vst [vmem:[%s5 + $0x8] sm:$0xff] %v593
  %610 = vst [vmem:[%s5 + $0x10] sm:$0xff] %v594
  %611 = vst [vmem:[%s5 + $0x18] sm:$0xff] %v595
  %612 = vst [vmem:[%s5 + $0x20] sm:$0xff] %v596
  %613 = vst [vmem:[%s5 + $0x28] sm:$0xff] %v597
  %614 = vst [vmem:[%s5 + $0x30] sm:$0xff] %v598
  %615 = vst [vmem:[%s5 + $0x38] sm:$0xff] %v599
  %616 = vst [vmem:[%s5 + $0x40] sm:$0xff] %v600
  %617 = vst [vmem:[%s5 + $0x48] sm:$0xff] %v601
  %618 = vst [vmem:[%s5 + $0x50] sm:$0xff] %v602
  %619 = vst [vmem:[%s5 + $0x58] sm:$0xff] %v603
  %620 = vst [vmem:[%s5 + $0x60] sm:$0xff] %v604
  %621 = vst [vmem:[%s5 + $0x68] sm:$0xff] %v605
  %622 = vst [vmem:[%s5 + $0x70] sm:$0xff] %v606
  %623 = vst [vmem:[%s5 + $0x78] sm:$0xff] %v607
  // Predicated region
  $region22: #{gnnstack_forward.5} parent=0 // pred_check
    _
  $region23: #{gnnstack_forward.5} parent=0 // pred_check_branch
    %625 = sbr.rel (0) target = $region25
  $region24: #{gnnstack_forward.5} parent=0 // pred_region
    _
  $region25: #{gnnstack_forward.5} parent=0 // pred_fallthru
    _
  // Predicated region
  $region26: #{gnnstack_forward.5} parent=0 // pred_check
    _
  $region27: #{gnnstack_forward.5} parent=0 // pred_check_branch
    %627 = sbr.rel (0) target = $region29
  $region28: #{gnnstack_forward.5} parent=0 // pred_region
    _
  $region29: #{gnnstack_forward.5} parent=0 // pred_fallthru
    _

// kernel: gnnstack_forward.3
$region0: #{gnnstack_forward.3}
  #allocation0 [shape = 'u32[]', space=smem, size = 0x4, offset = 0x4, fixed_abs, tag = 'smem constant byte address 0x4 - core index']
  #allocation1 [shape = 'u32[144,128]{1,0:T(1,128)}', space=vmem, size = 0x12000, scoped, tag = 'internal scratch']
  #allocation2 [shape = 'f32[128,128]{1,0:T(8,128)}', space=vmem, size = 0x10000, scoped, tag = 'scratch operand']
  #allocation3 [shape = 'f32[128,128]{1,0:T(8,128)}', space=vmem, size = 0x10000, scoped, tag = 'scratch operand']
  %s0 = inlined_call_operand.vmem [shape: s8[128,128], index: 0, kind: input, shape index: {}]
  %s1 = inlined_call_operand.vmem [shape: bf16[128,128], index: 1, kind: input, shape index: {}]
  %s2 = inlined_call_operand.vmem [shape: f32[128,1], index: 2, kind: input, shape index: {}]
  %s3 = inlined_call_operand.vmem [shape: bf16[128,128], index: 3, kind: input, shape index: {}]
  %s4 = inlined_call_operand.vmem [shape: f32[1,128], index: 4, kind: input, shape index: {}]
  %s5 = inlined_call_operand.vmem [shape: bf16[128,128], index: 5, kind: input, shape index: {}]
  %s6 = inlined_call_operand.vmem [shape: f32[1,128], index: 6, kind: input, shape index: {}]
  %s7 = inlined_call_operand.vmem [shape: bf16[128,128], index: 7, kind: output, shape index: {}]
  %s8 = sld [smem:[#allocation0]]
  $region46: #{gnnstack_forward.3} parent=0
    _
  %s10 = ssub.s32 1, %s8
  %s11 = scalar_select 0, %s10, %s8
  // Predicated region
  $region2: #{gnnstack_forward.3} parent=0 // pred_check
    _
  $region3: #{gnnstack_forward.3} parent=0 // pred_check_branch
    %13 = sbr.rel (0) target = $region5
  $region4: #{gnnstack_forward.3} parent=0 // pred_region
    _
  $region5: #{gnnstack_forward.3} parent=0 // pred_fallthru
    _
  // Predicated region
  $region6: #{gnnstack_forward.3} parent=0 // pred_check
    _
  $region7: #{gnnstack_forward.3} parent=0 // pred_check_branch
    %15 = sbr.rel (0) target = $region9
  $region8: #{gnnstack_forward.3} parent=0 // pred_region
    _
  $region9: #{gnnstack_forward.3} parent=0 // pred_fallthru
    _
  // Predicated region
  $region10: #{gnnstack_forward.3} parent=0 // pred_check
    _
  $region11: #{gnnstack_forward.3} parent=0 // pred_check_branch
    %17 = sbr.rel (0) target = $region13
  $region12: #{gnnstack_forward.3} parent=0 // pred_region
    _
  $region13: #{gnnstack_forward.3} parent=0 // pred_fallthru
    _
  // Predicated region
  $region14: #{gnnstack_forward.3} parent=0 // pred_check
    _
  $region15: #{gnnstack_forward.3} parent=0 // pred_check_branch
    %19 = sbr.rel (0) target = $region17
  $region16: #{gnnstack_forward.3} parent=0 // pred_region
    _
  $region17: #{gnnstack_forward.3} parent=0 // pred_fallthru
    _
  // Predicated region
  $region18: #{gnnstack_forward.3} parent=0 // pred_check
    _
  $region19: #{gnnstack_forward.3} parent=0 // pred_check_branch
    %21 = sbr.rel (0) target = $region21
  $region20: #{gnnstack_forward.3} parent=0 // pred_region
    _
  $region21: #{gnnstack_forward.3} parent=0 // pred_fallthru
    _
  // Predicated region
  $region22: #{gnnstack_forward.3} parent=0 // pred_check
    _
  $region23: #{gnnstack_forward.3} parent=0 // pred_check_branch
    %23 = sbr.rel (0) target = $region25
  $region24: #{gnnstack_forward.3} parent=0 // pred_region
    _
  $region25: #{gnnstack_forward.3} parent=0 // pred_fallthru
    _
  // Predicated region
  $region26: #{gnnstack_forward.3} parent=0 // pred_check
    _
  $region27: #{gnnstack_forward.3} parent=0 // pred_check_branch
    %25 = sbr.rel (0) target = $region29
  $region28: #{gnnstack_forward.3} parent=0 // pred_region
    _
  $region29: #{gnnstack_forward.3} parent=0 // pred_fallthru
    _
  %p27 = scmp.eq.s32.totalorder 0, 0
  // Predicated region
  $region30: #{gnnstack_forward.3} parent=0 // pred_check
    %p28 = pneg %p27
  $region31: #{gnnstack_forward.3} parent=0 // pred_check_branch
    %30 = sbr.rel (%p28) target = $region33
  $region32: #{gnnstack_forward.3} parent=0 // pred_region
    %31 = vst [vmem:[#allocation2] sm:$0xff] 0.0
    %32 = vst [vmem:[#allocation2 + $0x8] sm:$0xff] 0.0
    %33 = vst [vmem:[#allocation2 + $0x10] sm:$0xff] 0.0
    %34 = vst [vmem:[#allocation2 + $0x18] sm:$0xff] 0.0
    %35 = vst [vmem:[#allocation2 + $0x20] sm:$0xff] 0.0
    %36 = vst [vmem:[#allocation2 + $0x28] sm:$0xff] 0.0
    %37 = vst [vmem:[#allocation2 + $0x30] sm:$0xff] 0.0
    %38 = vst [vmem:[#allocation2 + $0x38] sm:$0xff] 0.0
    %39 = vst [vmem:[#allocation2 + $0x40] sm:$0xff] 0.0
    %40 = vst [vmem:[#allocation2 + $0x48] sm:$0xff] 0.0
    %41 = vst [vmem:[#allocation2 + $0x50] sm:$0xff] 0.0
    %42 = vst [vmem:[#allocation2 + $0x58] sm:$0xff] 0.0
    %43 = vst [vmem:[#allocation2 + $0x60] sm:$0xff] 0.0
    %44 = vst [vmem:[#allocation2 + $0x68] sm:$0xff] 0.0
    %45 = vst [vmem:[#allocation2 + $0x70] sm:$0xff] 0.0
    %46 = vst [vmem:[#allocation2 + $0x78] sm:$0xff] 0.0
    %s47 = smul.u32 0, 128
    %s48 = sshra.s32 %s47, 3
    %s49 = sand.u32 %s47, 7
    %s50 = smul.addr %s48, 4
    %s51 = scalar_lea.vmem %s1, %s50
    %v52 = vld [vmem:[%s51] sm:$0xf]
    %v53 = vld [vmem:[%s51 + $0x4] sm:$0xf]
    %v54 = vld [vmem:[%s51 + $0x8] sm:$0xf]
    %v55 = vld [vmem:[%s51 + $0xc] sm:$0xf]
    %v56 = vld [vmem:[%s51 + $0x10] sm:$0xf]
    %v57 = vld [vmem:[%s51 + $0x14] sm:$0xf]
    %v58 = vld [vmem:[%s51 + $0x18] sm:$0xf]
    %v59 = vld [vmem:[%s51 + $0x1c] sm:$0xf]
    %v60 = vld [vmem:[%s51 + $0x20] sm:$0xf]
    %v61 = vld [vmem:[%s51 + $0x24] sm:$0xf]
    %v62 = vld [vmem:[%s51 + $0x28] sm:$0xf]
    %v63 = vld [vmem:[%s51 + $0x2c] sm:$0xf]
    %v64 = vld [vmem:[%s51 + $0x30] sm:$0xf]
    %v65 = vld [vmem:[%s51 + $0x34] sm:$0xf]
    %v66 = vld [vmem:[%s51 + $0x38] sm:$0xf]
    %v67 = vld [vmem:[%s51 + $0x3c] sm:$0xf]
    %v68 = vld [vmem:[%s3] sm:$0xf]
    %v69 = vld [vmem:[%s3 + $0x4] sm:$0xf]
    %v70 = vld [vmem:[%s3 + $0x8] sm:$0xf]
    %v71 = vld [vmem:[%s3 + $0xc] sm:$0xf]
    %v72 = vld [vmem:[%s3 + $0x10] sm:$0xf]
    %v73 = vld [vmem:[%s3 + $0x14] sm:$0xf]
    %v74 = vld [vmem:[%s3 + $0x18] sm:$0xf]
    %v75 = vld [vmem:[%s3 + $0x1c] sm:$0xf]
    %v76 = vld [vmem:[%s3 + $0x20] sm:$0xf]
    %v77 = vld [vmem:[%s3 + $0x24] sm:$0xf]
    %v78 = vld [vmem:[%s3 + $0x28] sm:$0xf]
    %v79 = vld [vmem:[%s3 + $0x2c] sm:$0xf]
    %v80 = vld [vmem:[%s3 + $0x30] sm:$0xf]
    %v81 = vld [vmem:[%s3 + $0x34] sm:$0xf]
    %v82 = vld [vmem:[%s3 + $0x38] sm:$0xf]
    %v83 = vld [vmem:[%s3 + $0x3c] sm:$0xf]
    %v84 = vld [vmem:[%s4] sm:$0x1]
    %v86 = vlaneseq
    %v87 = vshrl.u32 %v86, 7
    %v88 = vsub.s32 0, %v87
    %v89 = vrot.slane %v84, %v88
    %v107 = vunpack.c.l.b16 %v52
    %v108 = vunpack.c.l.b16 %v53
    %v109 = vunpack.c.l.b16 %v54
    %v110 = vunpack.c.l.b16 %v55
    %v111 = vunpack.c.l.b16 %v56
    %v112 = vunpack.c.l.b16 %v57
    %v113 = vunpack.c.l.b16 %v58
    %v114 = vunpack.c.l.b16 %v59
    %v115 = vunpack.c.l.b16 %v60
    %v116 = vunpack.c.l.b16 %v61
    %v117 = vunpack.c.l.b16 %v62
    %v118 = vunpack.c.l.b16 %v63
    %v119 = vunpack.c.l.b16 %v64
    %v120 = vunpack.c.l.b16 %v65
    %v121 = vunpack.c.l.b16 %v66
    %v122 = vunpack.c.l.b16 %v67
    %v123 = vpack.c.b16 %v108, %v107
    %v124 = vpack.c.b16 %v110, %v109
    %v125 = vpack.c.b16 %v112, %v111
    %v126 = vpack.c.b16 %v114, %v113
    %v127 = vpack.c.b16 %v116, %v115
    %v128 = vpack.c.b16 %v118, %v117
    %v129 = vpack.c.b16 %v120, %v119
    %v130 = vpack.c.b16 %v122, %v121
    %v155 = vunpack.c.l.b16 %v68
    %v156 = vunpack.c.l.b16 %v69
    %v157 = vunpack.c.l.b16 %v70
    %v158 = vunpack.c.l.b16 %v71
    %v159 = vunpack.c.l.b16 %v72
    %v160 = vunpack.c.l.b16 %v73
    %v161 = vunpack.c.l.b16 %v74
    %v162 = vunpack.c.l.b16 %v75
    %v163 = vunpack.c.l.b16 %v76
    %v164 = vunpack.c.l.b16 %v77
    %v165 = vunpack.c.l.b16 %v78
    %v166 = vunpack.c.l.b16 %v79
    %v167 = vunpack.c.l.b16 %v80
    %v168 = vunpack.c.l.b16 %v81
    %v169 = vunpack.c.l.b16 %v82
    %v170 = vunpack.c.l.b16 %v83
    %v171 = vpack.c.b16 %v156, %v155
    %v172 = vpack.c.b16 %v158, %v157
    %v173 = vpack.c.b16 %v160, %v159
    %v174 = vpack.c.b16 %v162, %v161
    %v175 = vpack.c.b16 %v164, %v163
    %v176 = vpack.c.b16 %v166, %v165
    %v177 = vpack.c.b16 %v168, %v167
    %v178 = vpack.c.b16 %v170, %v169
    %187 = vmatprep.subr.bf16.mxu0 0
    %188 = vmatpush1.bf16.msra.mxu0 %v171
    %189 = vmatprep.subr.bf16.mxu0 0
    %190 = vmatpush1.bf16.msra.mxu0 %v172
    %191 = vmatprep.subr.bf16.mxu0 0
    %192 = vmatpush1.bf16.msra.mxu0 %v173
    %193 = vmatprep.subr.bf16.mxu0 0
    %194 = vmatpush1.bf16.msra.mxu0 %v174
    %195 = vmatprep.subr.bf16.mxu0 0
    %196 = vmatpush1.bf16.msra.mxu0 %v175
    %197 = vmatprep.subr.bf16.mxu0 0
    %198 = vmatpush1.bf16.msra.mxu0 %v176
    %199 = vmatprep.subr.bf16.mxu0 0
    %200 = vmatpush1.bf16.msra.mxu0 %v177
    %201 = vmatprep.subr.bf16.mxu0 0
    %202 = vmatpush1.bf16.msra.mxu0 %v178
    %203 = vmatprep.subr.bf16.mxu0 0
    %204 = vmatpush1.bf16.msra.mxu0 0
    %205 = vmatprep.subr.bf16.mxu0 0
    %206 = vmatpush1.bf16.msra.mxu0 0
    %207 = vmatprep.subr.bf16.mxu0 0
    %208 = vmatpush1.bf16.msra.mxu0 0
    %209 = vmatprep.subr.bf16.mxu0 0
    %210 = vmatpush1.bf16.msra.mxu0 0
    %211 = vmatprep.subr.bf16.mxu0 0
    %212 = vmatpush1.bf16.msra.mxu0 0
    %213 = vmatprep.subr.bf16.mxu0 0
    %214 = vmatpush1.bf16.msra.mxu0 0
    %215 = vmatprep.subr.bf16.mxu0 0
    %216 = vmatpush1.bf16.msra.mxu0 0
    %217 = vmatprep.subr.bf16.mxu0 0
    %218 = vmatpush1.bf16.msra.mxu0 0
    %219 = vmatprep.mubr.bf16.mxu0 0
    %220 = vmatmul.mubr.bf16.gmra.mrb[0].mxu0 %v123
    %v221 = vpop.f32.mrb[0].mxu0
    %v222 = vadd.f32 %v89, %v221
    %v223 = vpop.f32.mrb[0].mxu0
    %v224 = vpop.f32.mrb[0].mxu0
    %v225 = vadd.f32 %v89, %v224
    %v226 = vpop.f32.mrb[0].mxu0
    %227 = vmatprep.mubr.bf16.mxu0 0
    %228 = vmatmul.mubr.bf16.gmra.mrb[0].mxu0 %v124
    %v229 = vpop.f32.mrb[0].mxu0
    %v230 = vadd.f32 %v89, %v229
    %v231 = vpop.f32.mrb[0].mxu0
    %v232 = vpop.f32.mrb[0].mxu0
    %v233 = vadd.f32 %v89, %v232
    %v234 = vpop.f32.mrb[0].mxu0
    %235 = vmatprep.mubr.bf16.mxu0 0
    %236 = vmatmul.mubr.bf16.gmra.mrb[0].mxu0 %v125
    %v237 = vpop.f32.mrb[0].mxu0
    %v238 = vadd.f32 %v89, %v237
    %v239 = vpop.f32.mrb[0].mxu0
    %v240 = vpop.f32.mrb[0].mxu0
    %v241 = vadd.f32 %v89, %v240
    %v242 = vpop.f32.mrb[0].mxu0
    %243 = vmatprep.mubr.bf16.mxu0 0
    %244 = vmatmul.mubr.bf16.gmra.mrb[0].mxu0 %v126
    %v245 = vpop.f32.mrb[0].mxu0
    %v246 = vadd.f32 %v89, %v245
    %v247 = vpop.f32.mrb[0].mxu0
    %v248 = vpop.f32.mrb[0].mxu0
    %v249 = vadd.f32 %v89, %v248
    %v250 = vpop.f32.mrb[0].mxu0
    %251 = vmatprep.mubr.bf16.mxu0 0
    %252 = vmatmul.mubr.bf16.gmra.mrb[0].mxu0 %v127
    %v253 = vpop.f32.mrb[0].mxu0
    %v254 = vadd.f32 %v89, %v253
    %v255 = vpop.f32.mrb[0].mxu0
    %v256 = vpop.f32.mrb[0].mxu0
    %v257 = vadd.f32 %v89, %v256
    %v258 = vpop.f32.mrb[0].mxu0
    %259 = vmatprep.mubr.bf16.mxu0 0
    %260 = vmatmul.mubr.bf16.gmra.mrb[0].mxu0 %v128
    %v261 = vpop.f32.mrb[0].mxu0
    %v262 = vadd.f32 %v89, %v261
    %v263 = vpop.f32.mrb[0].mxu0
    %v264 = vpop.f32.mrb[0].mxu0
    %v265 = vadd.f32 %v89, %v264
    %v266 = vpop.f32.mrb[0].mxu0
    %267 = vmatprep.mubr.bf16.mxu0 0
    %268 = vmatmul.mubr.bf16.gmra.mrb[0].mxu0 %v129
    %v269 = vpop.f32.mrb[0].mxu0
    %v270 = vadd.f32 %v89, %v269
    %v271 = vpop.f32.mrb[0].mxu0
    %v272 = vpop.f32.mrb[0].mxu0
    %v273 = vadd.f32 %v89, %v272
    %v274 = vpop.f32.mrb[0].mxu0
    %275 = vmatprep.mubr.bf16.mxu0 0
    %276 = vmatmul.mubr.bf16.gmra.mrb[0].mxu0 %v130
    %v277 = vpop.f32.mrb[0].mxu0
    %v278 = vadd.f32 %v89, %v277
    %v279 = vpop.f32.mrb[0].mxu0
    %v280 = vpop.f32.mrb[0].mxu0
    %v281 = vadd.f32 %v89, %v280
    %v282 = vpop.f32.mrb[0].mxu0
    %283 = vdwg.mxu0
    %284 = vst [vmem:[#allocation3] sm:$0xff] %v222
    %285 = vst [vmem:[#allocation3 + $0x8] sm:$0xff] %v225
    %286 = vst [vmem:[#allocation3 + $0x10] sm:$0xff] %v230
    %287 = vst [vmem:[#allocation3 + $0x18] sm:$0xff] %v233
    %288 = vst [vmem:[#allocation3 + $0x20] sm:$0xff] %v238
    %289 = vst [vmem:[#allocation3 + $0x28] sm:$0xff] %v241
    %290 = vst [vmem:[#allocation3 + $0x30] sm:$0xff] %v246
    %291 = vst [vmem:[#allocation3 + $0x38] sm:$0xff] %v249
    %292 = vst [vmem:[#allocation3 + $0x40] sm:$0xff] %v254
    %293 = vst [vmem:[#allocation3 + $0x48] sm:$0xff] %v257
    %294 = vst [vmem:[#allocation3 + $0x50] sm:$0xff] %v262
    %295 = vst [vmem:[#allocation3 + $0x58] sm:$0xff] %v265
    %296 = vst [vmem:[#allocation3 + $0x60] sm:$0xff] %v270
    %297 = vst [vmem:[#allocation3 + $0x68] sm:$0xff] %v273
    %298 = vst [vmem:[#allocation3 + $0x70] sm:$0xff] %v278
    %299 = vst [vmem:[#allocation3 + $0x78] sm:$0xff] %v281
  $region33: #{gnnstack_forward.3} parent=0 // pred_fallthru
    _
  %v300 = vld [vmem:[%s0] sm:$0xff]
  %v301 = vld [vmem:[%s0 + $0x8] sm:$0xff]
  %v302 = vld [vmem:[%s0 + $0x10] sm:$0xff]
  %v303 = vld [vmem:[%s0 + $0x18] sm:$0xff]
  %v304 = vunpack.c.l.s8.bf16 %v300
  %v305 = vunpack.c.h.s8.bf16 %v300
  %v306 = vunpack.c.l.s8.bf16 %v301
  %v307 = vunpack.c.h.s8.bf16 %v301
  %v308 = vunpack.c.l.s8.bf16 %v302
  %v309 = vunpack.c.h.s8.bf16 %v302
  %v310 = vunpack.c.l.s8.bf16 %v303
  %v311 = vunpack.c.h.s8.bf16 %v303
  %s312 = smul.u32 0, 128
  %s313 = sshra.s32 %s312, 3
  %s314 = sand.u32 %s312, 7
  %s315 = smul.addr %s313, 4
  %s316 = scalar_lea.vmem %s1, %s315
  %v317 = vld [vmem:[%s316] sm:$0xf]
  %v318 = vld [vmem:[%s316 + $0x4] sm:$0xf]
  %v319 = vld [vmem:[%s316 + $0x8] sm:$0xf]
  %v320 = vld [vmem:[%s316 + $0xc] sm:$0xf]
  %v321 = vld [vmem:[%s316 + $0x10] sm:$0xf]
  %v322 = vld [vmem:[%s316 + $0x14] sm:$0xf]
  %v323 = vld [vmem:[%s316 + $0x18] sm:$0xf]
  %v324 = vld [vmem:[%s316 + $0x1c] sm:$0xf]
  %v325 = vld [vmem:[%s316 + $0x20] sm:$0xf]
  %v326 = vld [vmem:[%s316 + $0x24] sm:$0xf]
  %v327 = vld [vmem:[%s316 + $0x28] sm:$0xf]
  %v328 = vld [vmem:[%s316 + $0x2c] sm:$0xf]
  %v329 = vld [vmem:[%s316 + $0x30] sm:$0xf]
  %v330 = vld [vmem:[%s316 + $0x34] sm:$0xf]
  %v331 = vld [vmem:[%s316 + $0x38] sm:$0xf]
  %v332 = vld [vmem:[%s316 + $0x3c] sm:$0xf]
  %v333 = vld [vmem:[#allocation2] sm:$0xff]
  %v334 = vld [vmem:[#allocation2 + $0x8] sm:$0xff]
  %v335 = vld [vmem:[#allocation2 + $0x10] sm:$0xff]
  %v336 = vld [vmem:[#allocation2 + $0x18] sm:$0xff]
  %v337 = vld [vmem:[#allocation2 + $0x20] sm:$0xff]
  %v338 = vld [vmem:[#allocation2 + $0x28] sm:$0xff]
  %v339 = vld [vmem:[#allocation2 + $0x30] sm:$0xff]
  %v340 = vld [vmem:[#allocation2 + $0x38] sm:$0xff]
  %v341 = vld [vmem:[#allocation2 + $0x40] sm:$0xff]
  %v342 = vld [vmem:[#allocation2 + $0x48] sm:$0xff]
  %v343 = vld [vmem:[#allocation2 + $0x50] sm:$0xff]
  %v344 = vld [vmem:[#allocation2 + $0x58] sm:$0xff]
  %v345 = vld [vmem:[#allocation2 + $0x60] sm:$0xff]
  %v346 = vld [vmem:[#allocation2 + $0x68] sm:$0xff]
  %v347 = vld [vmem:[#allocation2 + $0x70] sm:$0xff]
  %v348 = vld [vmem:[#allocation2 + $0x78] sm:$0xff]
  %v365 = vunpack.c.l.b16 %v317
  %v366 = vunpack.c.l.b16 %v318
  %v367 = vunpack.c.l.b16 %v319
  %v368 = vunpack.c.l.b16 %v320
  %v369 = vunpack.c.l.b16 %v321
  %v370 = vunpack.c.l.b16 %v322
  %v371 = vunpack.c.l.b16 %v323
  %v372 = vunpack.c.l.b16 %v324
  %v373 = vunpack.c.l.b16 %v325
  %v374 = vunpack.c.l.b16 %v326
  %v375 = vunpack.c.l.b16 %v327
  %v376 = vunpack.c.l.b16 %v328
  %v377 = vunpack.c.l.b16 %v329
  %v378 = vunpack.c.l.b16 %v330
  %v379 = vunpack.c.l.b16 %v331
  %v380 = vunpack.c.l.b16 %v332
  %v381 = vpack.c.b16 %v366, %v365
  %v382 = vpack.c.b16 %v368, %v367
  %v383 = vpack.c.b16 %v370, %v369
  %v384 = vpack.c.b16 %v372, %v371
  %v385 = vpack.c.b16 %v374, %v373
  %v386 = vpack.c.b16 %v376, %v375
  %v387 = vpack.c.b16 %v378, %v377
  %v388 = vpack.c.b16 %v380, %v379
  %397 = vmatprep.subr.bf16.mxu0 0
  %398 = vmatpush1.bf16.msra.mxu0 %v381
  %399 = vmatprep.subr.bf16.mxu0 0
  %400 = vmatpush1.bf16.msra.mxu0 %v382
  %401 = vmatprep.subr.bf16.mxu0 0
  %402 = vmatpush1.bf16.msra.mxu0 %v383
  %403 = vmatprep.subr.bf16.mxu0 0
  %404 = vmatpush1.bf16.msra.mxu0 %v384
  %405 = vmatprep.subr.bf16.mxu0 0
  %406 = vmatpush1.bf16.msra.mxu0 %v385
  %407 = vmatprep.subr.bf16.mxu0 0
  %408 = vmatpush1.bf16.msra.mxu0 %v386
  %409 = vmatprep.subr.bf16.mxu0 0
  %410 = vmatpush1.bf16.msra.mxu0 %v387
  %411 = vmatprep.subr.bf16.mxu0 0
  %412 = vmatpush1.bf16.msra.mxu0 %v388
  %413 = vmatprep.subr.bf16.mxu0 0
  %414 = vmatpush1.bf16.msra.mxu0 0
  %415 = vmatprep.subr.bf16.mxu0 0
  %416 = vmatpush1.bf16.msra.mxu0 0
  %417 = vmatprep.subr.bf16.mxu0 0
  %418 = vmatpush1.bf16.msra.mxu0 0
  %419 = vmatprep.subr.bf16.mxu0 0
  %420 = vmatpush1.bf16.msra.mxu0 0
  %421 = vmatprep.subr.bf16.mxu0 0
  %422 = vmatpush1.bf16.msra.mxu0 0
  %423 = vmatprep.subr.bf16.mxu0 0
  %424 = vmatpush1.bf16.msra.mxu0 0
  %425 = vmatprep.subr.bf16.mxu0 0
  %426 = vmatpush1.bf16.msra.mxu0 0
  %427 = vmatprep.subr.bf16.mxu0 0
  %428 = vmatpush1.bf16.msra.mxu0 0
  %429 = vmatprep.mubr.bf16.mxu0 0
  %430 = vmatmul.mubr.bf16.gmra.mrb[0].mxu0 %v304
  %v431 = vpop.f32.mrb[0].mxu0
  %v432 = vadd.f32 0.0, %v431
  %v433 = vpop.f32.mrb[0].mxu0
  %v434 = vpop.f32.mrb[0].mxu0
  %v435 = vadd.f32 0.0, %v434
  %v436 = vpop.f32.mrb[0].mxu0
  %437 = vmatprep.mubr.bf16.mxu0 0
  %438 = vmatmul.mubr.bf16.gmra.mrb[0].mxu0 %v305
  %v439 = vpop.f32.mrb[0].mxu0
  %v440 = vadd.f32 0.0, %v439
  %v441 = vpop.f32.mrb[0].mxu0
  %v442 = vpop.f32.mrb[0].mxu0
  %v443 = vadd.f32 0.0, %v442
  %v444 = vpop.f32.mrb[0].mxu0
  %445 = vmatprep.mubr.bf16.mxu0 0
  %446 = vmatmul.mubr.bf16.gmra.mrb[0].mxu0 %v306
  %v447 = vpop.f32.mrb[0].mxu0
  %v448 = vadd.f32 0.0, %v447
  %v449 = vpop.f32.mrb[0].mxu0
  %v450 = vpop.f32.mrb[0].mxu0
  %v451 = vadd.f32 0.0, %v450
  %v452 = vpop.f32.mrb[0].mxu0
  %453 = vmatprep.mubr.bf16.mxu0 0
  %454 = vmatmul.mubr.bf16.gmra.mrb[0].mxu0 %v307
  %v455 = vpop.f32.mrb[0].mxu0
  %v456 = vadd.f32 0.0, %v455
  %v457 = vpop.f32.mrb[0].mxu0
  %v458 = vpop.f32.mrb[0].mxu0
  %v459 = vadd.f32 0.0, %v458
  %v460 = vpop.f32.mrb[0].mxu0
  %461 = vmatprep.mubr.bf16.mxu0 0
  %462 = vmatmul.mubr.bf16.gmra.mrb[0].mxu0 %v308
  %v463 = vpop.f32.mrb[0].mxu0
  %v464 = vadd.f32 0.0, %v463
  %v465 = vpop.f32.mrb[0].mxu0
  %v466 = vpop.f32.mrb[0].mxu0
  %v467 = vadd.f32 0.0, %v466
  %v468 = vpop.f32.mrb[0].mxu0
  %469 = vmatprep.mubr.bf16.mxu0 0
  %470 = vmatmul.mubr.bf16.gmra.mrb[0].mxu0 %v309
  %v471 = vpop.f32.mrb[0].mxu0
  %v472 = vadd.f32 0.0, %v471
  %v473 = vpop.f32.mrb[0].mxu0
  %v474 = vpop.f32.mrb[0].mxu0
  %v475 = vadd.f32 0.0, %v474
  %v476 = vpop.f32.mrb[0].mxu0
  %477 = vmatprep.mubr.bf16.mxu0 0
  %478 = vmatmul.mubr.bf16.gmra.mrb[0].mxu0 %v310
  %v479 = vpop.f32.mrb[0].mxu0
  %v480 = vadd.f32 0.0, %v479
  %v481 = vpop.f32.mrb[0].mxu0
  %v482 = vpop.f32.mrb[0].mxu0
  %v483 = vadd.f32 0.0, %v482
  %v484 = vpop.f32.mrb[0].mxu0
  %485 = vmatprep.mubr.bf16.mxu0 0
  %486 = vmatmul.mubr.bf16.gmra.mrb[0].mxu0 %v311
  %v487 = vpop.f32.mrb[0].mxu0
  %v488 = vadd.f32 0.0, %v487
  %v489 = vpop.f32.mrb[0].mxu0
  %v490 = vpop.f32.mrb[0].mxu0
  %v491 = vadd.f32 0.0, %v490
  %v492 = vpop.f32.mrb[0].mxu0
  %493 = vdwg.mxu0
  %v494 = vadd.f32 %v333, %v432
  %v495 = vadd.f32 %v334, %v435
  %v496 = vadd.f32 %v335, %v440
  %v497 = vadd.f32 %v336, %v443
  %v498 = vadd.f32 %v337, %v448
  %v499 = vadd.f32 %v338, %v451
  %v500 = vadd.f32 %v339, %v456
  %v501 = vadd.f32 %v340, %v459
  %v502 = vadd.f32 %v341, %v464
  %v503 = vadd.f32 %v342, %v467
  %v504 = vadd.f32 %v343, %v472
  %v505 = vadd.f32 %v344, %v475
  %v506 = vadd.f32 %v345, %v480
  %v507 = vadd.f32 %v346, %v483
  %v508 = vadd.f32 %v347, %v488
  %v509 = vadd.f32 %v348, %v491
  %510 = vst [vmem:[#allocation2] sm:$0xff] %v494
  %511 = vst [vmem:[#allocation2 + $0x8] sm:$0xff] %v495
  %512 = vst [vmem:[#allocation2 + $0x10] sm:$0xff] %v496
  %513 = vst [vmem:[#allocation2 + $0x18] sm:$0xff] %v497
  %514 = vst [vmem:[#allocation2 + $0x20] sm:$0xff] %v498
  %515 = vst [vmem:[#allocation2 + $0x28] sm:$0xff] %v499
  %516 = vst [vmem:[#allocation2 + $0x30] sm:$0xff] %v500
  %517 = vst [vmem:[#allocation2 + $0x38] sm:$0xff] %v501
  %518 = vst [vmem:[#allocation2 + $0x40] sm:$0xff] %v502
  %519 = vst [vmem:[#allocation2 + $0x48] sm:$0xff] %v503
  %520 = vst [vmem:[#allocation2 + $0x50] sm:$0xff] %v504
  %521 = vst [vmem:[#allocation2 + $0x58] sm:$0xff] %v505
  %522 = vst [vmem:[#allocation2 + $0x60] sm:$0xff] %v506
  %523 = vst [vmem:[#allocation2 + $0x68] sm:$0xff] %v507
  %524 = vst [vmem:[#allocation2 + $0x70] sm:$0xff] %v508
  %525 = vst [vmem:[#allocation2 + $0x78] sm:$0xff] %v509
  // Predicated region
  $region34: #{gnnstack_forward.3} parent=0 // pred_check
    %p526 = pneg %p27
  $region35: #{gnnstack_forward.3} parent=0 // pred_check_branch
    %528 = sbr.rel (%p526) target = $region37
  $region36: #{gnnstack_forward.3} parent=0 // pred_region
    %v529 = vld [vmem:[#allocation2] sm:$0xff]
    %v530 = vld [vmem:[#allocation2 + $0x8] sm:$0xff]
    %v531 = vld [vmem:[#allocation2 + $0x10] sm:$0xff]
    %v532 = vld [vmem:[#allocation2 + $0x18] sm:$0xff]
    %v533 = vld [vmem:[#allocation2 + $0x20] sm:$0xff]
    %v534 = vld [vmem:[#allocation2 + $0x28] sm:$0xff]
    %v535 = vld [vmem:[#allocation2 + $0x30] sm:$0xff]
    %v536 = vld [vmem:[#allocation2 + $0x38] sm:$0xff]
    %v537 = vld [vmem:[#allocation2 + $0x40] sm:$0xff]
    %v538 = vld [vmem:[#allocation2 + $0x48] sm:$0xff]
    %v539 = vld [vmem:[#allocation2 + $0x50] sm:$0xff]
    %v540 = vld [vmem:[#allocation2 + $0x58] sm:$0xff]
    %v541 = vld [vmem:[#allocation2 + $0x60] sm:$0xff]
    %v542 = vld [vmem:[#allocation2 + $0x68] sm:$0xff]
    %v543 = vld [vmem:[#allocation2 + $0x70] sm:$0xff]
    %v544 = vld [vmem:[#allocation2 + $0x78] sm:$0xff]
    %v545 = vld [vmem:[%s2] sm:$0xff]
    %v546 = vld [vmem:[%s2 + $0x8] sm:$0xff]
    %v547 = vld [vmem:[%s2 + $0x10] sm:$0xff]
    %v548 = vld [vmem:[%s2 + $0x18] sm:$0xff]
    %v549 = vld [vmem:[%s2 + $0x20] sm:$0xff]
    %v550 = vld [vmem:[%s2 + $0x28] sm:$0xff]
    %v551 = vld [vmem:[%s2 + $0x30] sm:$0xff]
    %v552 = vld [vmem:[%s2 + $0x38] sm:$0xff]
    %v553 = vld [vmem:[%s2 + $0x40] sm:$0xff]
    %v554 = vld [vmem:[%s2 + $0x48] sm:$0xff]
    %v555 = vld [vmem:[%s2 + $0x50] sm:$0xff]
    %v556 = vld [vmem:[%s2 + $0x58] sm:$0xff]
    %v557 = vld [vmem:[%s2 + $0x60] sm:$0xff]
    %v558 = vld [vmem:[%s2 + $0x68] sm:$0xff]
    %v559 = vld [vmem:[%s2 + $0x70] sm:$0xff]
    %v560 = vld [vmem:[%s2 + $0x78] sm:$0xff]
    %562 = vset.pattern.permute.xlu0 0
    %563 = vperm.xlu0 %562, %v545
    %v564 = vpop.permute.xlu0 %563
    %567 = vset.pattern.permute.xlu0 0
    %568 = vperm.xlu0 %567, %v546
    %v569 = vpop.permute.xlu0 %568
    %572 = vset.pattern.permute.xlu0 0
    %573 = vperm.xlu0 %572, %v547
    %v574 = vpop.permute.xlu0 %573
    %577 = vset.pattern.permute.xlu0 0
    %578 = vperm.xlu0 %577, %v548
    %v579 = vpop.permute.xlu0 %578
    %582 = vset.pattern.permute.xlu0 0
    %583 = vperm.xlu0 %582, %v549
    %v584 = vpop.permute.xlu0 %583
    %587 = vset.pattern.permute.xlu0 0
    %588 = vperm.xlu0 %587, %v550
    %v589 = vpop.permute.xlu0 %588
    %592 = vset.pattern.permute.xlu0 0
    %593 = vperm.xlu0 %592, %v551
    %v594 = vpop.permute.xlu0 %593
    %597 = vset.pattern.permute.xlu0 0
    %598 = vperm.xlu0 %597, %v552
    %v599 = vpop.permute.xlu0 %598
    %602 = vset.pattern.permute.xlu0 0
    %603 = vperm.xlu0 %602, %v553
    %v604 = vpop.permute.xlu0 %603
    %607 = vset.pattern.permute.xlu0 0
    %608 = vperm.xlu0 %607, %v554
    %v609 = vpop.permute.xlu0 %608
    %612 = vset.pattern.permute.xlu0 0
    %613 = vperm.xlu0 %612, %v555
    %v614 = vpop.permute.xlu0 %613
    %617 = vset.pattern.permute.xlu0 0
    %618 = vperm.xlu0 %617, %v556
    %v619 = vpop.permute.xlu0 %618
    %622 = vset.pattern.permute.xlu0 0
    %623 = vperm.xlu0 %622, %v557
    %v624 = vpop.permute.xlu0 %623
    %627 = vset.pattern.permute.xlu0 0
    %628 = vperm.xlu0 %627, %v558
    %v629 = vpop.permute.xlu0 %628
    %632 = vset.pattern.permute.xlu0 0
    %633 = vperm.xlu0 %632, %v559
    %v634 = vpop.permute.xlu0 %633
    %637 = vset.pattern.permute.xlu0 0
    %638 = vperm.xlu0 %637, %v560
    %v639 = vpop.permute.xlu0 %638
    %v641 = vmul.f32 %v529, %v564
    %v642 = vmul.f32 %v530, %v569
    %v643 = vmul.f32 %v531, %v574
    %v644 = vmul.f32 %v532, %v579
    %v645 = vmul.f32 %v533, %v584
    %v646 = vmul.f32 %v534, %v589
    %v647 = vmul.f32 %v535, %v594
    %v648 = vmul.f32 %v536, %v599
    %v649 = vmul.f32 %v537, %v604
    %v650 = vmul.f32 %v538, %v609
    %v651 = vmul.f32 %v539, %v614
    %v652 = vmul.f32 %v540, %v619
    %v653 = vmul.f32 %v541, %v624
    %v654 = vmul.f32 %v542, %v629
    %v655 = vmul.f32 %v543, %v634
    %v656 = vmul.f32 %v544, %v639
    %v657 = vpack.c.bf16 %v642, %v641
    %v658 = vpack.c.bf16 %v644, %v643
    %v659 = vpack.c.bf16 %v646, %v645
    %v660 = vpack.c.bf16 %v648, %v647
    %v661 = vpack.c.bf16 %v650, %v649
    %v662 = vpack.c.bf16 %v652, %v651
    %v663 = vpack.c.bf16 %v654, %v653
    %v664 = vpack.c.bf16 %v656, %v655
    %v665 = vld [vmem:[#allocation3] sm:$0xff]
    %v666 = vld [vmem:[#allocation3 + $0x8] sm:$0xff]
    %v667 = vld [vmem:[#allocation3 + $0x10] sm:$0xff]
    %v668 = vld [vmem:[#allocation3 + $0x18] sm:$0xff]
    %v669 = vld [vmem:[#allocation3 + $0x20] sm:$0xff]
    %v670 = vld [vmem:[#allocation3 + $0x28] sm:$0xff]
    %v671 = vld [vmem:[#allocation3 + $0x30] sm:$0xff]
    %v672 = vld [vmem:[#allocation3 + $0x38] sm:$0xff]
    %v673 = vld [vmem:[#allocation3 + $0x40] sm:$0xff]
    %v674 = vld [vmem:[#allocation3 + $0x48] sm:$0xff]
    %v675 = vld [vmem:[#allocation3 + $0x50] sm:$0xff]
    %v676 = vld [vmem:[#allocation3 + $0x58] sm:$0xff]
    %v677 = vld [vmem:[#allocation3 + $0x60] sm:$0xff]
    %v678 = vld [vmem:[#allocation3 + $0x68] sm:$0xff]
    %v679 = vld [vmem:[#allocation3 + $0x70] sm:$0xff]
    %v680 = vld [vmem:[#allocation3 + $0x78] sm:$0xff]
    %v681 = vld [vmem:[%s5] sm:$0xf]
    %v682 = vld [vmem:[%s5 + $0x4] sm:$0xf]
    %v683 = vld [vmem:[%s5 + $0x8] sm:$0xf]
    %v684 = vld [vmem:[%s5 + $0xc] sm:$0xf]
    %v685 = vld [vmem:[%s5 + $0x10] sm:$0xf]
    %v686 = vld [vmem:[%s5 + $0x14] sm:$0xf]
    %v687 = vld [vmem:[%s5 + $0x18] sm:$0xf]
    %v688 = vld [vmem:[%s5 + $0x1c] sm:$0xf]
    %v689 = vld [vmem:[%s5 + $0x20] sm:$0xf]
    %v690 = vld [vmem:[%s5 + $0x24] sm:$0xf]
    %v691 = vld [vmem:[%s5 + $0x28] sm:$0xf]
    %v692 = vld [vmem:[%s5 + $0x2c] sm:$0xf]
    %v693 = vld [vmem:[%s5 + $0x30] sm:$0xf]
    %v694 = vld [vmem:[%s5 + $0x34] sm:$0xf]
    %v695 = vld [vmem:[%s5 + $0x38] sm:$0xf]
    %v696 = vld [vmem:[%s5 + $0x3c] sm:$0xf]
    %v713 = vunpack.c.l.b16 %v681
    %v714 = vunpack.c.l.b16 %v682
    %v715 = vunpack.c.l.b16 %v683
    %v716 = vunpack.c.l.b16 %v684
    %v717 = vunpack.c.l.b16 %v685
    %v718 = vunpack.c.l.b16 %v686
    %v719 = vunpack.c.l.b16 %v687
    %v720 = vunpack.c.l.b16 %v688
    %v721 = vunpack.c.l.b16 %v689
    %v722 = vunpack.c.l.b16 %v690
    %v723 = vunpack.c.l.b16 %v691
    %v724 = vunpack.c.l.b16 %v692
    %v725 = vunpack.c.l.b16 %v693
    %v726 = vunpack.c.l.b16 %v694
    %v727 = vunpack.c.l.b16 %v695
    %v728 = vunpack.c.l.b16 %v696
    %v729 = vpack.c.b16 %v714, %v713
    %v730 = vpack.c.b16 %v716, %v715
    %v731 = vpack.c.b16 %v718, %v717
    %v732 = vpack.c.b16 %v720, %v719
    %v733 = vpack.c.b16 %v722, %v721
    %v734 = vpack.c.b16 %v724, %v723
    %v735 = vpack.c.b16 %v726, %v725
    %v736 = vpack.c.b16 %v728, %v727
    %745 = vmatprep.subr.bf16.mxu0 0
    %746 = vmatpush1.bf16.msra.mxu0 %v729
    %747 = vmatprep.subr.bf16.mxu0 0
    %748 = vmatpush1.bf16.msra.mxu0 %v730
    %749 = vmatprep.subr.bf16.mxu0 0
    %750 = vmatpush1.bf16.msra.mxu0 %v731
    %751 = vmatprep.subr.bf16.mxu0 0
    %752 = vmatpush1.bf16.msra.mxu0 %v732
    %753 = vmatprep.subr.bf16.mxu0 0
    %754 = vmatpush1.bf16.msra.mxu0 %v733
    %755 = vmatprep.subr.bf16.mxu0 0
    %756 = vmatpush1.bf16.msra.mxu0 %v734
    %757 = vmatprep.subr.bf16.mxu0 0
    %758 = vmatpush1.bf16.msra.mxu0 %v735
    %759 = vmatprep.subr.bf16.mxu0 0
    %760 = vmatpush1.bf16.msra.mxu0 %v736
    %761 = vmatprep.subr.bf16.mxu0 0
    %762 = vmatpush1.bf16.msra.mxu0 0
    %763 = vmatprep.subr.bf16.mxu0 0
    %764 = vmatpush1.bf16.msra.mxu0 0
    %765 = vmatprep.subr.bf16.mxu0 0
    %766 = vmatpush1.bf16.msra.mxu0 0
    %767 = vmatprep.subr.bf16.mxu0 0
    %768 = vmatpush1.bf16.msra.mxu0 0
    %769 = vmatprep.subr.bf16.mxu0 0
    %770 = vmatpush1.bf16.msra.mxu0 0
    %771 = vmatprep.subr.bf16.mxu0 0
    %772 = vmatpush1.bf16.msra.mxu0 0
    %773 = vmatprep.subr.bf16.mxu0 0
    %774 = vmatpush1.bf16.msra.mxu0 0
    %775 = vmatprep.subr.bf16.mxu0 0
    %776 = vmatpush1.bf16.msra.mxu0 0
    %777 = vmatprep.mubr.bf16.mxu0 0
    %778 = vmatmul.mubr.bf16.gmra.mrb[0].mxu0 %v657
    %v779 = vpop.f32.mrb[0].mxu0
    %v780 = vadd.f32 0.0, %v779
    %v781 = vpop.f32.mrb[0].mxu0
    %v782 = vpop.f32.mrb[0].mxu0
    %v783 = vadd.f32 0.0, %v782
    %v784 = vpop.f32.mrb[0].mxu0
    %785 = vmatprep.mubr.bf16.mxu0 0
    %786 = vmatmul.mubr.bf16.gmra.mrb[0].mxu0 %v658
    %v787 = vpop.f32.mrb[0].mxu0
    %v788 = vadd.f32 0.0, %v787
    %v789 = vpop.f32.mrb[0].mxu0
    %v790 = vpop.f32.mrb[0].mxu0
    %v791 = vadd.f32 0.0, %v790
    %v792 = vpop.f32.mrb[0].mxu0
    %793 = vmatprep.mubr.bf16.mxu0 0
    %794 = vmatmul.mubr.bf16.gmra.mrb[0].mxu0 %v659
    %v795 = vpop.f32.mrb[0].mxu0
    %v796 = vadd.f32 0.0, %v795
    %v797 = vpop.f32.mrb[0].mxu0
    %v798 = vpop.f32.mrb[0].mxu0
    %v799 = vadd.f32 0.0, %v798
    %v800 = vpop.f32.mrb[0].mxu0
    %801 = vmatprep.mubr.bf16.mxu0 0
    %802 = vmatmul.mubr.bf16.gmra.mrb[0].mxu0 %v660
    %v803 = vpop.f32.mrb[0].mxu0
    %v804 = vadd.f32 0.0, %v803
    %v805 = vpop.f32.mrb[0].mxu0
    %v806 = vpop.f32.mrb[0].mxu0
    %v807 = vadd.f32 0.0, %v806
    %v808 = vpop.f32.mrb[0].mxu0
    %809 = vmatprep.mubr.bf16.mxu0 0
    %810 = vmatmul.mubr.bf16.gmra.mrb[0].mxu0 %v661
    %v811 = vpop.f32.mrb[0].mxu0
    %v812 = vadd.f32 0.0, %v811
    %v813 = vpop.f32.mrb[0].mxu0
    %v814 = vpop.f32.mrb[0].mxu0
    %v815 = vadd.f32 0.0, %v814
    %v816 = vpop.f32.mrb[0].mxu0
    %817 = vmatprep.mubr.bf16.mxu0 0
    %818 = vmatmul.mubr.bf16.gmra.mrb[0].mxu0 %v662
    %v819 = vpop.f32.mrb[0].mxu0
    %v820 = vadd.f32 0.0, %v819
    %v821 = vpop.f32.mrb[0].mxu0
    %v822 = vpop.f32.mrb[0].mxu0
    %v823 = vadd.f32 0.0, %v822
    %v824 = vpop.f32.mrb[0].mxu0
    %825 = vmatprep.mubr.bf16.mxu0 0
    %826 = vmatmul.mubr.bf16.gmra.mrb[0].mxu0 %v663
    %v827 = vpop.f32.mrb[0].mxu0
    %v828 = vadd.f32 0.0, %v827
    %v829 = vpop.f32.mrb[0].mxu0
    %v830 = vpop.f32.mrb[0].mxu0
    %v831 = vadd.f32 0.0, %v830
    %v832 = vpop.f32.mrb[0].mxu0
    %833 = vmatprep.mubr.bf16.mxu0 0
    %834 = vmatmul.mubr.bf16.gmra.mrb[0].mxu0 %v664
    %v835 = vpop.f32.mrb[0].mxu0
    %v836 = vadd.f32 0.0, %v835
    %v837 = vpop.f32.mrb[0].mxu0
    %v838 = vpop.f32.mrb[0].mxu0
    %v839 = vadd.f32 0.0, %v838
    %v840 = vpop.f32.mrb[0].mxu0
    %841 = vdwg.mxu0
    %v842 = vadd.f32 %v665, %v780
    %v843 = vadd.f32 %v666, %v783
    %v844 = vadd.f32 %v667, %v788
    %v845 = vadd.f32 %v668, %v791
    %v846 = vadd.f32 %v669, %v796
    %v847 = vadd.f32 %v670, %v799
    %v848 = vadd.f32 %v671, %v804
    %v849 = vadd.f32 %v672, %v807
    %v850 = vadd.f32 %v673, %v812
    %v851 = vadd.f32 %v674, %v815
    %v852 = vadd.f32 %v675, %v820
    %v853 = vadd.f32 %v676, %v823
    %v854 = vadd.f32 %v677, %v828
    %v855 = vadd.f32 %v678, %v831
    %v856 = vadd.f32 %v679, %v836
    %v857 = vadd.f32 %v680, %v839
    %v858 = vld [vmem:[%s6] sm:$0x1]
    %v860 = vlaneseq
    %v861 = vshrl.u32 %v860, 7
    %v862 = vsub.s32 0, %v861
    %v863 = vrot.slane %v858, %v862
    %v865 = vadd.f32 %v842, %v863
    %v866 = vadd.f32 %v843, %v863
    %v867 = vadd.f32 %v844, %v863
    %v868 = vadd.f32 %v845, %v863
    %v869 = vadd.f32 %v846, %v863
    %v870 = vadd.f32 %v847, %v863
    %v871 = vadd.f32 %v848, %v863
    %v872 = vadd.f32 %v849, %v863
    %v873 = vadd.f32 %v850, %v863
    %v874 = vadd.f32 %v851, %v863
    %v875 = vadd.f32 %v852, %v863
    %v876 = vadd.f32 %v853, %v863
    %v877 = vadd.f32 %v854, %v863
    %v878 = vadd.f32 %v855, %v863
    %v879 = vadd.f32 %v856, %v863
    %v880 = vadd.f32 %v857, %v863
    %v881 = vmul.f32 %v865, %v865
    %v882 = vmul.f32 %v866, %v866
    %v883 = vmul.f32 %v867, %v867
    %v884 = vmul.f32 %v868, %v868
    %v885 = vmul.f32 %v869, %v869
    %v886 = vmul.f32 %v870, %v870
    %v887 = vmul.f32 %v871, %v871
    %v888 = vmul.f32 %v872, %v872
    %v889 = vmul.f32 %v873, %v873
    %v890 = vmul.f32 %v874, %v874
    %v891 = vmul.f32 %v875, %v875
    %v892 = vmul.f32 %v876, %v876
    %v893 = vmul.f32 %v877, %v877
    %v894 = vmul.f32 %v878, %v878
    %v895 = vmul.f32 %v879, %v879
    %v896 = vmul.f32 %v880, %v880
    %897 = vadd.xlane.f32.xlu0 %v881
    %v898 = vpop.xlane.xlu0 %897
    %899 = vadd.xlane.f32.xlu0 %v882
    %v900 = vpop.xlane.xlu0 %899
    %901 = vadd.xlane.f32.xlu0 %v883
    %v902 = vpop.xlane.xlu0 %901
    %903 = vadd.xlane.f32.xlu0 %v884
    %v904 = vpop.xlane.xlu0 %903
    %905 = vadd.xlane.f32.xlu0 %v885
    %v906 = vpop.xlane.xlu0 %905
    %907 = vadd.xlane.f32.xlu0 %v886
    %v908 = vpop.xlane.xlu0 %907
    %909 = vadd.xlane.f32.xlu0 %v887
    %v910 = vpop.xlane.xlu0 %909
    %911 = vadd.xlane.f32.xlu0 %v888
    %v912 = vpop.xlane.xlu0 %911
    %913 = vadd.xlane.f32.xlu0 %v889
    %v914 = vpop.xlane.xlu0 %913
    %915 = vadd.xlane.f32.xlu0 %v890
    %v916 = vpop.xlane.xlu0 %915
    %917 = vadd.xlane.f32.xlu0 %v891
    %v918 = vpop.xlane.xlu0 %917
    %919 = vadd.xlane.f32.xlu0 %v892
    %v920 = vpop.xlane.xlu0 %919
    %921 = vadd.xlane.f32.xlu0 %v893
    %v922 = vpop.xlane.xlu0 %921
    %923 = vadd.xlane.f32.xlu0 %v894
    %v924 = vpop.xlane.xlu0 %923
    %925 = vadd.xlane.f32.xlu0 %v895
    %v926 = vpop.xlane.xlu0 %925
    %927 = vadd.xlane.f32.xlu0 %v896
    %v928 = vpop.xlane.xlu0 %927
    %v929 = vmax.f32 %v898, 1e-24
    %v930 = vmax.f32 %v900, 1e-24
    %v931 = vmax.f32 %v902, 1e-24
    %v932 = vmax.f32 %v904, 1e-24
    %v933 = vmax.f32 %v906, 1e-24
    %v934 = vmax.f32 %v908, 1e-24
    %v935 = vmax.f32 %v910, 1e-24
    %v936 = vmax.f32 %v912, 1e-24
    %v937 = vmax.f32 %v914, 1e-24
    %v938 = vmax.f32 %v916, 1e-24
    %v939 = vmax.f32 %v918, 1e-24
    %v940 = vmax.f32 %v920, 1e-24
    %v941 = vmax.f32 %v922, 1e-24
    %v942 = vmax.f32 %v924, 1e-24
    %v943 = vmax.f32 %v926, 1e-24
    %v944 = vmax.f32 %v928, 1e-24
    %v945 = vrsqrt.pop %v929
    %v946 = vrsqrt.pop %v930
    %v947 = vrsqrt.pop %v931
    %v948 = vrsqrt.pop %v932
    %v949 = vrsqrt.pop %v933
    %v950 = vrsqrt.pop %v934
    %v951 = vrsqrt.pop %v935
    %v952 = vrsqrt.pop %v936
    %v953 = vrsqrt.pop %v937
    %v954 = vrsqrt.pop %v938
    %v955 = vrsqrt.pop %v939
    %v956 = vrsqrt.pop %v940
    %v957 = vrsqrt.pop %v941
    %v958 = vrsqrt.pop %v942
    %v959 = vrsqrt.pop %v943
    %v960 = vrsqrt.pop %v944
    %v961 = vmul.f32 %v865, %v945
    %v962 = vmul.f32 %v866, %v946
    %v963 = vmul.f32 %v867, %v947
    %v964 = vmul.f32 %v868, %v948
    %v965 = vmul.f32 %v869, %v949
    %v966 = vmul.f32 %v870, %v950
    %v967 = vmul.f32 %v871, %v951
    %v968 = vmul.f32 %v872, %v952
    %v969 = vmul.f32 %v873, %v953
    %v970 = vmul.f32 %v874, %v954
    %v971 = vmul.f32 %v875, %v955
    %v972 = vmul.f32 %v876, %v956
    %v973 = vmul.f32 %v877, %v957
    %v974 = vmul.f32 %v878, %v958
    %v975 = vmul.f32 %v879, %v959
    %v976 = vmul.f32 %v880, %v960
    %v977 = vmax.f32 %v961, 0.0
    %v978 = vmax.f32 %v962, 0.0
    %v979 = vmax.f32 %v963, 0.0
    %v980 = vmax.f32 %v964, 0.0
    %v981 = vmax.f32 %v965, 0.0
    %v982 = vmax.f32 %v966, 0.0
    %v983 = vmax.f32 %v967, 0.0
    %v984 = vmax.f32 %v968, 0.0
    %v985 = vmax.f32 %v969, 0.0
    %v986 = vmax.f32 %v970, 0.0
    %v987 = vmax.f32 %v971, 0.0
    %v988 = vmax.f32 %v972, 0.0
    %v989 = vmax.f32 %v973, 0.0
    %v990 = vmax.f32 %v974, 0.0
    %v991 = vmax.f32 %v975, 0.0
    %v992 = vmax.f32 %v976, 0.0
    %v993 = vpack.c.bf16 %v978, %v977
    %v994 = vpack.c.bf16 %v980, %v979
    %v995 = vpack.c.bf16 %v982, %v981
    %v996 = vpack.c.bf16 %v984, %v983
    %v997 = vpack.c.bf16 %v986, %v985
    %v998 = vpack.c.bf16 %v988, %v987
    %v999 = vpack.c.bf16 %v990, %v989
    %v1000 = vpack.c.bf16 %v992, %v991
    %v1009 = vunpack.c.l.b16 %v993
    %v1010 = vunpack.c.h.b16 %v993
    %v1011 = vunpack.c.l.b16 %v994
    %v1012 = vunpack.c.h.b16 %v994
    %v1013 = vunpack.c.l.b16 %v995
    %v1014 = vunpack.c.h.b16 %v995
    %v1015 = vunpack.c.l.b16 %v996
    %v1016 = vunpack.c.h.b16 %v996
    %v1017 = vunpack.c.l.b16 %v997
    %v1018 = vunpack.c.h.b16 %v997
    %v1019 = vunpack.c.l.b16 %v998
    %v1020 = vunpack.c.h.b16 %v998
    %v1021 = vunpack.c.l.b16 %v999
    %v1022 = vunpack.c.h.b16 %v999
    %v1023 = vunpack.c.l.b16 %v1000
    %v1024 = vunpack.c.h.b16 %v1000
    %v1025 = vpack.c.b16 %v1009, %v1009
    %v1026 = vpack.c.b16 %v1010, %v1010
    %v1027 = vpack.c.b16 %v1011, %v1011
    %v1028 = vpack.c.b16 %v1012, %v1012
    %v1029 = vpack.c.b16 %v1013, %v1013
    %v1030 = vpack.c.b16 %v1014, %v1014
    %v1031 = vpack.c.b16 %v1015, %v1015
    %v1032 = vpack.c.b16 %v1016, %v1016
    %v1033 = vpack.c.b16 %v1017, %v1017
    %v1034 = vpack.c.b16 %v1018, %v1018
    %v1035 = vpack.c.b16 %v1019, %v1019
    %v1036 = vpack.c.b16 %v1020, %v1020
    %v1037 = vpack.c.b16 %v1021, %v1021
    %v1038 = vpack.c.b16 %v1022, %v1022
    %v1039 = vpack.c.b16 %v1023, %v1023
    %v1040 = vpack.c.b16 %v1024, %v1024
    %1057 = vst [vmem:[%s7] sm:$0xf] %v1025
    %1058 = vst [vmem:[%s7 + $0x4] sm:$0xf] %v1026
    %1059 = vst [vmem:[%s7 + $0x8] sm:$0xf] %v1027
    %1060 = vst [vmem:[%s7 + $0xc] sm:$0xf] %v1028
    %1061 = vst [vmem:[%s7 + $0x10] sm:$0xf] %v1029
    %1062 = vst [vmem:[%s7 + $0x14] sm:$0xf] %v1030
    %1063 = vst [vmem:[%s7 + $0x18] sm:$0xf] %v1031
    %1064 = vst [vmem:[%s7 + $0x1c] sm:$0xf] %v1032
    %1065 = vst [vmem:[%s7 + $0x20] sm:$0xf] %v1033
    %1066 = vst [vmem:[%s7 + $0x24] sm:$0xf] %v1034
    %1067 = vst [vmem:[%s7 + $0x28] sm:$0xf] %v1035
    %1068 = vst [vmem:[%s7 + $0x2c] sm:$0xf] %v1036
    %1069 = vst [vmem:[%s7 + $0x30] sm:$0xf] %v1037
    %1070 = vst [vmem:[%s7 + $0x34] sm:$0xf] %v1038
    %1071 = vst [vmem:[%s7 + $0x38] sm:$0xf] %v1039
    %1072 = vst [vmem:[%s7 + $0x3c] sm:$0xf] %v1040
  $region37: #{gnnstack_forward.3} parent=0 // pred_fallthru
    _
  // Predicated region
  $region38: #{gnnstack_forward.3} parent=0 // pred_check
    _
  $region39: #{gnnstack_forward.3} parent=0 // pred_check_branch
    %1074 = sbr.rel (0) target = $region41
  $region40: #{gnnstack_forward.3} parent=0 // pred_region
    _
  $region41: #{gnnstack_forward.3} parent=0 // pred_fallthru
    _
  // Predicated region
  $region42: #{gnnstack_forward.3} parent=0 // pred_check
    _
  $region43: #{gnnstack_forward.3} parent=0 // pred_check_branch
    %1076 = sbr.rel (0) target = $region45
  $region44: #{gnnstack_forward.3} parent=0 // pred_region
    _
  $region45: #{gnnstack_forward.3} parent=0 // pred_fallthru
    _

</llo_original>
